<compile_context>
chip_gen: v7x
topology: tpu7x:2x2x1
jax: 0.10.0
libtpu: 0.0.40
codegen_flags: <defaults>
</compile_context>

<pallas_src>
import math

import jax
import jax.numpy as jnp
from jax.experimental import pallas as pl
from jax.experimental.pallas import tpu as pltpu

# ----------------------------- model dims -----------------------------------
B = 2          # batch
C = 4          # image channels
H = W = 16     # image spatial
PS = 4         # patch size
P = (H // PS) * (W // PS)   # 16 patches (encoder "sequence")
PD = C * PS * PS            # 64 patch dim
D = 32         # hidden size
F = 4 * D      # FFN hidden (128)
S = 8          # target sequence length
V = 128        # vocab size (exactly one lane vreg wide)
EPS = 1e-5


# ------------------------- fused encoder+decoder kernel ----------------------
def fused_kernel(patches_ref, tgt_ref,
                 wpatch_ref, bpatch_ref, pos_enc_ref,
                 tok_emb_ref, pos_dec_ref,
                 wqkv1_ref, wo1_ref,
                 wq2_ref, wkv2_ref, wo2_ref,
                 w1_ref, b1_ref, w2_ref, b2_ref,
                 ln1g_ref, ln1b_ref, ln2g_ref, ln2b_ref, ln3g_ref, ln3b_ref,
                 wout_ref, bout_ref,
                 out_ref):
    f32 = jnp.float32
    bf16 = jnp.bfloat16

    # ---- encoder: patch-embed (conv-as-matmul) + pos embedding, on-chip -----
    px = patches_ref[0].astype(bf16)                              # (P, PD)
    mem = (jnp.dot(px, wpatch_ref[...], preferred_element_type=f32)
           + bpatch_ref[...] + pos_enc_ref[...])                  # (P, D) f32

    # ---- token embedding: lane-dense one-hot matmul --------------------------
    ids = tgt_ref[0]                                              # (S, 1) int32
    vocab_iota = jax.lax.broadcasted_iota(jnp.int32, (S, V), 1)
    onehot = (ids == vocab_iota).astype(bf16)                     # (S, V)
    x = (jnp.dot(onehot, tok_emb_ref[...], preferred_element_type=f32)
         + pos_dec_ref[...])                                      # (S, D) f32

    def layernorm(v, g_ref, b_ref):
        mu = jnp.mean(v, axis=-1, keepdims=True)
        var = jnp.mean((v - mu) ** 2, axis=-1, keepdims=True)
        return (v - mu) * jax.lax.rsqrt(var + EPS) * g_ref[...] + b_ref[...]

    def softmax(scores):                                          # f32 in/out
        scores = scores - jnp.max(scores, axis=-1, keepdims=True)
        e = jnp.exp(scores)
        return e * pl.reciprocal(jnp.sum(e, axis=-1, keepdims=True), approx=True)

    # ---- causal self-attention (pre-LN), packed QKV projection ---------------
    xn = layernorm(x, ln1g_ref, ln1b_ref).astype(bf16)
    qkv = jnp.dot(xn, wqkv1_ref[...], preferred_element_type=f32) # (S, 3D)
    q = qkv[:, 0:D]          # 1/sqrt(D) already folded into wq at init
    k = qkv[:, D:2 * D]
    v = qkv[:, 2 * D:3 * D]
    s = jnp.dot(q, k.T, preferred_element_type=f32)               # (S, S) f32
    row = jax.lax.broadcasted_iota(jnp.int32, (S, S), 0)
    col = jax.lax.broadcasted_iota(jnp.int32, (S, S), 1)
    s = jnp.where(col <= row, s, jnp.float32(-1e30))
    p = softmax(s)
    o = jnp.dot(p, v, preferred_element_type=f32)                 # (S, D)
    h = x + jnp.dot(o.astype(bf16), wo1_ref[...], preferred_element_type=f32)

    # ---- cross-attention to encoder memory (packed K/V projection) -----------
    hn = layernorm(h, ln2g_ref, ln2b_ref).astype(bf16)
    q2 = jnp.dot(hn, wq2_ref[...], preferred_element_type=f32)    # (S, D), scaled
    kv2 = jnp.dot(mem.astype(bf16), wkv2_ref[...],
                  preferred_element_type=f32)                     # (P, 2D)
    k2 = kv2[:, 0:D]
    v2 = kv2[:, D:2 * D]
    s2 = jnp.dot(q2, k2.T, preferred_element_type=f32)            # (S, P)
    p2 = softmax(s2)
    o2 = jnp.dot(p2, v2, preferred_element_type=f32)              # (S, D)
    h = h + jnp.dot(o2.astype(bf16), wo2_ref[...], preferred_element_type=f32)

    # ---- feed-forward ---------------------------------------------------------
    hn = layernorm(h, ln3g_ref, ln3b_ref).astype(bf16)
    ff = jnp.dot(hn, w1_ref[...], preferred_element_type=f32) + b1_ref[...]
    ff = jnp.maximum(ff, 0.0).astype(bf16)
    ff = jnp.dot(ff, w2_ref[...], preferred_element_type=f32) + b2_ref[...]
    h = h + ff

    # ---- vocab head -> logits (V=128: unmasked, lane-dense store) ------------
    logits = (jnp.dot(h.astype(bf16), wout_ref[...], preferred_element_type=f32)
              + bout_ref[...])
    out_ref[0] = logits                                           # (S, V)


def run_encoder_decoder(patches, tgt_ids, params):
    wspec = lambda shape: pl.BlockSpec(shape, lambda b: (0, 0))
    return pl.pallas_call(
        fused_kernel,
        out_shape=jax.ShapeDtypeStruct((B, S, V), jnp.float32),
        grid_spec=pltpu.PrefetchScalarGridSpec(
            num_scalar_prefetch=0,
            grid=(B,),
            in_specs=[
                pl.BlockSpec((1, P, PD), lambda b: (b, 0, 0)),    # image patches
                pl.BlockSpec((1, S, 1), lambda b: (b, 0, 0)),     # target token ids
                wspec((PD, D)), wspec((1, D)), wspec((P, D)),     # encoder
                wspec((V, D)), wspec((S, D)),                     # embeddings
                wspec((D, 3 * D)), wspec((D, D)),                 # self-attn (packed)
                wspec((D, D)), wspec((D, 2 * D)), wspec((D, D)),  # cross-attn (packed)
                wspec((D, F)), wspec((1, F)), wspec((F, D)), wspec((1, D)),  # FFN
                wspec((1, D)), wspec((1, D)),                     # LN1
                wspec((1, D)), wspec((1, D)),                     # LN2
                wspec((1, D)), wspec((1, D)),                     # LN3
                wspec((D, V)), wspec((1, V)),                     # head
            ],
            out_specs=pl.BlockSpec((1, S, V), lambda b: (b, 0, 0)),
        ),
        compiler_params=pltpu.CompilerParams(
            dimension_semantics=("parallel",)),   # v7x: B=2 -> two TensorCores
    )(patches, tgt_ids,
      params["w_patch"], params["b_patch"], params["pos_enc"],
      params["tok_emb"], params["pos_dec"],
      params["wqkv1"], params["wo1"],
      params["wq2"], params["wkv2"], params["wo2"],
      params["w1"], params["b1"], params["w2"], params["b2"],
      params["ln1g"], params["ln1b"], params["ln2g"], params["ln2b"],
      params["ln3g"], params["ln3b"],
      params["wout"], params["bout"])


# ----------------------------- glue / wrapper --------------------------------
def patchify(image):
    # image: (B, C, H, W) NCHW -> (B, P, C*PS*PS); conv patch-embed -> matmul.
    x = image.reshape(B, C, H // PS, PS, W // PS, PS)
    x = jnp.transpose(x, (0, 2, 4, 1, 3, 5))          # (B, Hp, Wp, C, ps, ps)
    return x.reshape(B, P, PD)


def init_params(key):
    keys = jax.random.split(key, 16)
    g = lambda k, shape: jax.random.normal(k, shape, jnp.float32) * 0.02
    bf16 = jnp.bfloat16
    scale = jnp.float32(1.0 / math.sqrt(D))
    p = {}
    # encoder
    p["w_patch"] = g(keys[0], (PD, D)).astype(bf16)
    p["b_patch"] = jnp.zeros((1, D), jnp.float32)
    p["pos_enc"] = g(keys[1], (P, D))
    # decoder embeddings
    p["tok_emb"] = g(keys[2], (V, D)).astype(bf16)
    p["pos_dec"] = g(keys[3], (S, D))
    # self-attention: pack [wq*scale | wk | wv] once at init -> single MXU push
    wq1, wk1, wv1 = (g(keys[4 + i], (D, D)) for i in range(3))
    p["wqkv1"] = jnp.concatenate([wq1 * scale, wk1, wv1], axis=1).astype(bf16)
    p["wo1"] = g(keys[7], (D, D)).astype(bf16)
    # cross-attention: scale folded into wq2; pack [wk2 | wv2] for the memory side
    p["wq2"] = (g(keys[8], (D, D)) * scale).astype(bf16)
    wk2, wv2 = g(keys[9], (D, D)), g(keys[10], (D, D))
    p["wkv2"] = jnp.concatenate([wk2, wv2], axis=1).astype(bf16)
    p["wo2"] = g(keys[11], (D, D)).astype(bf16)
    # FFN
    p["w1"] = g(keys[12], (D, F)).astype(bf16)
    p["b1"] = jnp.zeros((1, F), jnp.float32)
    p["w2"] = g(keys[13], (F, D)).astype(bf16)
    p["b2"] = jnp.zeros((1, D), jnp.float32)
    # layer norms (f32)
    for i in (1, 2, 3):
        p[f"ln{i}g"] = jnp.ones((1, D), jnp.float32)
        p[f"ln{i}b"] = jnp.zeros((1, D), jnp.float32)
    # output head
    p["wout"] = g(keys[14], (D, V)).astype(bf16)
    p["bout"] = jnp.zeros((1, V), jnp.float32)
    return p


@jax.jit
def encoder_decoder_forward(image, tgt, params):
    # encoder(image) -> decoder(encoder_out, tgt), all inside one fused kernel.
    patches = patchify(image)
    tgt_ids = tgt.reshape(B, S, 1).astype(jnp.int32)
    return run_encoder_decoder(patches, tgt_ids, params)   # (B, S, V) logits
# TODO(synk): EncoderDecoder.predict (autoregressive greedy decode) is not implemented.


if __name__ == "__main__":
    key = jax.random.PRNGKey(0)
    k_img, k_tgt, k_par = jax.random.split(key, 3)

    image = jax.random.normal(k_img, (B, C, H, W), jnp.float32)        # NCHW
    tgt = jax.random.randint(k_tgt, (B, S), 0, V, jnp.int32)           # token ids
    params = init_params(k_par)

    preds = encoder_decoder_forward(image, tgt, params)
    jax.block_until_ready(preds)

    assert preds.shape == (B, S, V) and preds.dtype == jnp.float32
    assert bool(jnp.all(jnp.isfinite(preds)))
    print("KERNEL_OK")
</pallas_src>

<mosaic_0001>
module attributes {stable_mosaic.version = 11 : i64} {
  func.func @fused_kernel(%arg0: i32, %arg1: memref<1x16x64xf32, #tpu.memory_space<vmem>>, %arg2: memref<1x8x1xi32, #tpu.memory_space<vmem>>, %arg3: memref<64x32xbf16, #tpu.memory_space<vmem>>, %arg4: memref<1x32xf32, #tpu.memory_space<vmem>>, %arg5: memref<16x32xf32, #tpu.memory_space<vmem>>, %arg6: memref<128x32xbf16, #tpu.memory_space<vmem>>, %arg7: memref<8x32xf32, #tpu.memory_space<vmem>>, %arg8: memref<32x96xbf16, #tpu.memory_space<vmem>>, %arg9: memref<32x32xbf16, #tpu.memory_space<vmem>>, %arg10: memref<32x32xbf16, #tpu.memory_space<vmem>>, %arg11: memref<32x64xbf16, #tpu.memory_space<vmem>>, %arg12: memref<32x32xbf16, #tpu.memory_space<vmem>>, %arg13: memref<32x128xbf16, #tpu.memory_space<vmem>>, %arg14: memref<1x128xf32, #tpu.memory_space<vmem>>, %arg15: memref<128x32xbf16, #tpu.memory_space<vmem>>, %arg16: memref<1x32xf32, #tpu.memory_space<vmem>>, %arg17: memref<1x32xf32, #tpu.memory_space<vmem>>, %arg18: memref<1x32xf32, #tpu.memory_space<vmem>>, %arg19: memref<1x32xf32, #tpu.memory_space<vmem>>, %arg20: memref<1x32xf32, #tpu.memory_space<vmem>>, %arg21: memref<1x32xf32, #tpu.memory_space<vmem>>, %arg22: memref<1x32xf32, #tpu.memory_space<vmem>>, %arg23: memref<32x128xbf16, #tpu.memory_space<vmem>>, %arg24: memref<1x128xf32, #tpu.memory_space<vmem>>, %arg25: memref<1x8x128xf32, #tpu.memory_space<vmem>>) attributes {dimension_semantics = [#tpu.dimension_semantics<parallel>], iteration_bounds = array<i64: 2>, scalar_prefetch = 0 : i64, scratch_operands = 0 : i64, tpu.core_type = #tpu.core_type<tc>, window_params = [{transform_indices = @transform_0, window_bounds = array<i64: 1, 16, 64>}, {transform_indices = @transform_1, window_bounds = array<i64: 1, 8, 1>}, {pipeline_mode = #tpu.pipeline_mode<synchronous>, transform_indices = @transform_2, window_bounds = array<i64: 64, 32>}, {pipeline_mode = #tpu.pipeline_mode<synchronous>, transform_indices = @transform_3, window_bounds = array<i64: 1, 32>}, {pipeline_mode = #tpu.pipeline_mode<synchronous>, transform_indices = @transform_4, window_bounds = array<i64: 16, 32>}, {pipeline_mode = #tpu.pipeline_mode<synchronous>, transform_indices = @transform_5, window_bounds = array<i64: 128, 32>}, {pipeline_mode = #tpu.pipeline_mode<synchronous>, transform_indices = @transform_6, window_bounds = array<i64: 8, 32>}, {pipeline_mode = #tpu.pipeline_mode<synchronous>, transform_indices = @transform_7, window_bounds = array<i64: 32, 96>}, {pipeline_mode = #tpu.pipeline_mode<synchronous>, transform_indices = @transform_8, window_bounds = array<i64: 32, 32>}, {pipeline_mode = #tpu.pipeline_mode<synchronous>, transform_indices = @transform_9, window_bounds = array<i64: 32, 32>}, {pipeline_mode = #tpu.pipeline_mode<synchronous>, transform_indices = @transform_10, window_bounds = array<i64: 32, 64>}, {pipeline_mode = #tpu.pipeline_mode<synchronous>, transform_indices = @transform_11, window_bounds = array<i64: 32, 32>}, {pipeline_mode = #tpu.pipeline_mode<synchronous>, transform_indices = @transform_12, window_bounds = array<i64: 32, 128>}, {pipeline_mode = #tpu.pipeline_mode<synchronous>, transform_indices = @transform_13, window_bounds = array<i64: 1, 128>}, {pipeline_mode = #tpu.pipeline_mode<synchronous>, transform_indices = @transform_14, window_bounds = array<i64: 128, 32>}, {pipeline_mode = #tpu.pipeline_mode<synchronous>, transform_indices = @transform_15, window_bounds = array<i64: 1, 32>}, {pipeline_mode = #tpu.pipeline_mode<synchronous>, transform_indices = @transform_16, window_bounds = array<i64: 1, 32>}, {pipeline_mode = #tpu.pipeline_mode<synchronous>, transform_indices = @transform_17, window_bounds = array<i64: 1, 32>}, {pipeline_mode = #tpu.pipeline_mode<synchronous>, transform_indices = @transform_18, window_bounds = array<i64: 1, 32>}, {pipeline_mode = #tpu.pipeline_mode<synchronous>, transform_indices = @transform_19, window_bounds = array<i64: 1, 32>}, {pipeline_mode = #tpu.pipeline_mode<synchronous>, transform_indices = @transform_20, window_bounds = array<i64: 1, 32>}, {pipeline_mode = #tpu.pipeline_mode<synchronous>, transform_indices = @transform_21, window_bounds = array<i64: 1, 32>}, {pipeline_mode = #tpu.pipeline_mode<synchronous>, transform_indices = @transform_22, window_bounds = array<i64: 32, 128>}, {pipeline_mode = #tpu.pipeline_mode<synchronous>, transform_indices = @transform_23, window_bounds = array<i64: 1, 128>}, {transform_indices = @transform_24, window_bounds = array<i64: 1, 8, 128>}]} {
    %c0 = arith.constant 0 : index
    %c0_0 = arith.constant 0 : index
    %c0_1 = arith.constant 0 : index
    %0 = vector.load %arg1[%c0, %c0_0, %c0_1] : memref<1x16x64xf32, #tpu.memory_space<vmem>>, vector<1x16x64xf32>
    %1 = vector.shape_cast %0 : vector<1x16x64xf32> to vector<16x64xf32>
    %2 = arith.truncf %1 : vector<16x64xf32> to vector<16x64xbf16>
    %c0_2 = arith.constant 0 : index
    %c0_3 = arith.constant 0 : index
    %3 = vector.load %arg3[%c0_2, %c0_3] : memref<64x32xbf16, #tpu.memory_space<vmem>>, vector<64x32xbf16>
    %cst = arith.constant dense<0.000000e+00> : vector<16x32xf32>
    %4 = tpu.matmul %2, %3, %cst {dimension_numbers = #tpu.dot_dimension_numbers<[1], [0], [0], [1], [0, 0, 1, 1], [], []>} : vector<16x64xbf16>, vector<64x32xbf16>, vector<16x32xf32> -> vector<16x32xf32>
    %c0_4 = arith.constant 0 : index
    %c0_5 = arith.constant 0 : index
    %5 = vector.load %arg4[%c0_4, %c0_5] : memref<1x32xf32, #tpu.memory_space<vmem>>, vector<1x32xf32>
    %6 = vector.broadcast %5 : vector<1x32xf32> to vector<16x32xf32>
    %7 = arith.addf %4, %6 : vector<16x32xf32>
    %c0_6 = arith.constant 0 : index
    %c0_7 = arith.constant 0 : index
    %8 = vector.load %arg5[%c0_6, %c0_7] : memref<16x32xf32, #tpu.memory_space<vmem>>, vector<16x32xf32>
    %9 = arith.addf %7, %8 : vector<16x32xf32>
    %c0_8 = arith.constant 0 : index
    %c0_9 = arith.constant 0 : index
    %c0_10 = arith.constant 0 : index
    %10 = vector.load %arg2[%c0_8, %c0_9, %c0_10] : memref<1x8x1xi32, #tpu.memory_space<vmem>>, vector<1x8x1xi32>
    %11 = vector.shape_cast %10 : vector<1x8x1xi32> to vector<8x1xi32>
    %12 = tpu.iota {dimensions = array<i32: 1>} : vector<8x128xi32>
    %13 = vector.broadcast %11 : vector<8x1xi32> to vector<8x128xi32>
    %14 = arith.cmpi eq, %13, %12 : vector<8x128xi32>
    %15 = arith.extui %14 : vector<8x128xi1> to vector<8x128xi32>
    %16 = arith.sitofp %15 : vector<8x128xi32> to vector<8x128xf32>
    %17 = arith.truncf %16 : vector<8x128xf32> to vector<8x128xbf16>
    %c0_11 = arith.constant 0 : index
    %c0_12 = arith.constant 0 : index
    %18 = vector.load %arg6[%c0_11, %c0_12] : memref<128x32xbf16, #tpu.memory_space<vmem>>, vector<128x32xbf16>
    %cst_13 = arith.constant dense<0.000000e+00> : vector<8x32xf32>
    %19 = tpu.matmul %17, %18, %cst_13 {dimension_numbers = #tpu.dot_dimension_numbers<[1], [0], [0], [1], [0, 0, 1, 1], [], []>} : vector<8x128xbf16>, vector<128x32xbf16>, vector<8x32xf32> -> vector<8x32xf32>
    %c0_14 = arith.constant 0 : index
    %c0_15 = arith.constant 0 : index
    %20 = vector.load %arg7[%c0_14, %c0_15] : memref<8x32xf32, #tpu.memory_space<vmem>>, vector<8x32xf32>
    %21 = arith.addf %19, %20 : vector<8x32xf32>
    %cst_16 = arith.constant dense<0.000000e+00> : vector<8xf32>
    %22 = vector.multi_reduction <add>, %21, %cst_16 [1] : vector<8x32xf32> to vector<8xf32>
    %23 = vector.shape_cast %22 : vector<8xf32> to vector<8x1xf32>
    %cst_17 = arith.constant 3.200000e+01 : f32
    %24 = vector.broadcast %cst_17 : f32 to vector<8x1xf32>
    %25 = arith.divf %23, %24 : vector<8x1xf32>
    %26 = vector.broadcast %25 : vector<8x1xf32> to vector<8x32xf32>
    %27 = arith.subf %21, %26 : vector<8x32xf32>
    %28 = arith.mulf %27, %27 : vector<8x32xf32>
    %cst_18 = arith.constant dense<0.000000e+00> : vector<8xf32>
    %29 = vector.multi_reduction <add>, %28, %cst_18 [1] : vector<8x32xf32> to vector<8xf32>
    %30 = vector.shape_cast %29 : vector<8xf32> to vector<8x1xf32>
    %cst_19 = arith.constant 3.200000e+01 : f32
    %31 = vector.broadcast %cst_19 : f32 to vector<8x1xf32>
    %32 = arith.divf %30, %31 : vector<8x1xf32>
    %33 = vector.broadcast %25 : vector<8x1xf32> to vector<8x32xf32>
    %34 = arith.subf %21, %33 : vector<8x32xf32>
    %cst_20 = arith.constant 9.99999974E-6 : f32
    %35 = vector.broadcast %cst_20 : f32 to vector<8x1xf32>
    %36 = arith.addf %32, %35 : vector<8x1xf32>
    %37 = math.rsqrt %36 : vector<8x1xf32>
    %38 = vector.broadcast %37 : vector<8x1xf32> to vector<8x32xf32>
    %39 = arith.mulf %34, %38 : vector<8x32xf32>
    %c0_21 = arith.constant 0 : index
    %c0_22 = arith.constant 0 : index
    %40 = vector.load %arg17[%c0_21, %c0_22] : memref<1x32xf32, #tpu.memory_space<vmem>>, vector<1x32xf32>
    %41 = vector.broadcast %40 : vector<1x32xf32> to vector<8x32xf32>
    %42 = arith.mulf %39, %41 : vector<8x32xf32>
    %c0_23 = arith.constant 0 : index
    %c0_24 = arith.constant 0 : index
    %43 = vector.load %arg18[%c0_23, %c0_24] : memref<1x32xf32, #tpu.memory_space<vmem>>, vector<1x32xf32>
    %44 = vector.broadcast %43 : vector<1x32xf32> to vector<8x32xf32>
    %45 = arith.addf %42, %44 : vector<8x32xf32>
    %46 = arith.truncf %45 : vector<8x32xf32> to vector<8x32xbf16>
    %c0_25 = arith.constant 0 : index
    %c0_26 = arith.constant 0 : index
    %47 = vector.load %arg8[%c0_25, %c0_26] : memref<32x96xbf16, #tpu.memory_space<vmem>>, vector<32x96xbf16>
    %cst_27 = arith.constant dense<0.000000e+00> : vector<8x96xf32>
    %48 = tpu.matmul %46, %47, %cst_27 {dimension_numbers = #tpu.dot_dimension_numbers<[1], [0], [0], [1], [0, 0, 1, 1], [], []>} : vector<8x32xbf16>, vector<32x96xbf16>, vector<8x96xf32> -> vector<8x96xf32>
    %49 = vector.extract_strided_slice %48 {offsets = [0, 0], sizes = [8, 32], strides = [1, 1]} : vector<8x96xf32> to vector<8x32xf32>
    %50 = vector.extract_strided_slice %48 {offsets = [0, 32], sizes = [8, 32], strides = [1, 1]} : vector<8x96xf32> to vector<8x32xf32>
    %51 = vector.extract_strided_slice %48 {offsets = [0, 64], sizes = [8, 32], strides = [1, 1]} : vector<8x96xf32> to vector<8x32xf32>
    %52 = tpu.transpose %50, [1, 0] : vector<8x32xf32> -> vector<32x8xf32>
    %cst_28 = arith.constant dense<0.000000e+00> : vector<8x8xf32>
    %53 = tpu.matmul %49, %52, %cst_28 {dimension_numbers = #tpu.dot_dimension_numbers<[1], [0], [0], [1], [0, 0, 1, 1], [], []>} : vector<8x32xf32>, vector<32x8xf32>, vector<8x8xf32> -> vector<8x8xf32>
    %54 = tpu.iota {dimensions = array<i32: 0>} : vector<8x8xi32>
    %55 = tpu.iota {dimensions = array<i32: 1>} : vector<8x8xi32>
    %56 = arith.cmpi sle, %55, %54 : vector<8x8xi32>
    %cst_29 = arith.constant -1.000000e+30 : f32
    %57 = vector.broadcast %cst_29 : f32 to vector<8x8xf32>
    %58 = arith.select %56, %53, %57 : vector<8x8xi1>, vector<8x8xf32>
    %cst_30 = arith.constant dense<0xFF800000> : vector<8xf32>
    %59 = vector.multi_reduction <maximumf>, %58, %cst_30 [1] : vector<8x8xf32> to vector<8xf32>
    %60 = vector.shape_cast %59 : vector<8xf32> to vector<8x1xf32>
    %61 = vector.broadcast %60 : vector<8x1xf32> to vector<8x8xf32>
    %62 = arith.subf %58, %61 : vector<8x8xf32>
    %63 = math.exp %62 : vector<8x8xf32>
    %cst_31 = arith.constant dense<0.000000e+00> : vector<8xf32>
    %64 = vector.multi_reduction <add>, %63, %cst_31 [1] : vector<8x8xf32> to vector<8xf32>
    %65 = vector.shape_cast %64 : vector<8xf32> to vector<8x1xf32>
    %66 = tpu.reciprocal %65 {approx = true} : vector<8x1xf32> -> vector<8x1xf32>
    %67 = vector.broadcast %66 : vector<8x1xf32> to vector<8x8xf32>
    %68 = arith.mulf %63, %67 : vector<8x8xf32>
    %cst_32 = arith.constant dense<0.000000e+00> : vector<8x32xf32>
    %69 = tpu.matmul %68, %51, %cst_32 {dimension_numbers = #tpu.dot_dimension_numbers<[1], [0], [0], [1], [0, 0, 1, 1], [], []>} : vector<8x8xf32>, vector<8x32xf32>, vector<8x32xf32> -> vector<8x32xf32>
    %70 = arith.truncf %69 : vector<8x32xf32> to vector<8x32xbf16>
    %c0_33 = arith.constant 0 : index
    %c0_34 = arith.constant 0 : index
    %71 = vector.load %arg9[%c0_33, %c0_34] : memref<32x32xbf16, #tpu.memory_space<vmem>>, vector<32x32xbf16>
    %cst_35 = arith.constant dense<0.000000e+00> : vector<8x32xf32>
    %72 = tpu.matmul %70, %71, %cst_35 {dimension_numbers = #tpu.dot_dimension_numbers<[1], [0], [0], [1], [0, 0, 1, 1], [], []>} : vector<8x32xbf16>, vector<32x32xbf16>, vector<8x32xf32> -> vector<8x32xf32>
    %73 = arith.addf %21, %72 : vector<8x32xf32>
    %cst_36 = arith.constant dense<0.000000e+00> : vector<8xf32>
    %74 = vector.multi_reduction <add>, %73, %cst_36 [1] : vector<8x32xf32> to vector<8xf32>
    %75 = vector.shape_cast %74 : vector<8xf32> to vector<8x1xf32>
    %cst_37 = arith.constant 3.200000e+01 : f32
    %76 = vector.broadcast %cst_37 : f32 to vector<8x1xf32>
    %77 = arith.divf %75, %76 : vector<8x1xf32>
    %78 = vector.broadcast %77 : vector<8x1xf32> to vector<8x32xf32>
    %79 = arith.subf %73, %78 : vector<8x32xf32>
    %80 = arith.mulf %79, %79 : vector<8x32xf32>
    %cst_38 = arith.constant dense<0.000000e+00> : vector<8xf32>
    %81 = vector.multi_reduction <add>, %80, %cst_38 [1] : vector<8x32xf32> to vector<8xf32>
    %82 = vector.shape_cast %81 : vector<8xf32> to vector<8x1xf32>
    %cst_39 = arith.constant 3.200000e+01 : f32
    %83 = vector.broadcast %cst_39 : f32 to vector<8x1xf32>
    %84 = arith.divf %82, %83 : vector<8x1xf32>
    %85 = vector.broadcast %77 : vector<8x1xf32> to vector<8x32xf32>
    %86 = arith.subf %73, %85 : vector<8x32xf32>
    %cst_40 = arith.constant 9.99999974E-6 : f32
    %87 = vector.broadcast %cst_40 : f32 to vector<8x1xf32>
    %88 = arith.addf %84, %87 : vector<8x1xf32>
    %89 = math.rsqrt %88 : vector<8x1xf32>
    %90 = vector.broadcast %89 : vector<8x1xf32> to vector<8x32xf32>
    %91 = arith.mulf %86, %90 : vector<8x32xf32>
    %c0_41 = arith.constant 0 : index
    %c0_42 = arith.constant 0 : index
    %92 = vector.load %arg19[%c0_41, %c0_42] : memref<1x32xf32, #tpu.memory_space<vmem>>, vector<1x32xf32>
    %93 = vector.broadcast %92 : vector<1x32xf32> to vector<8x32xf32>
    %94 = arith.mulf %91, %93 : vector<8x32xf32>
    %c0_43 = arith.constant 0 : index
    %c0_44 = arith.constant 0 : index
    %95 = vector.load %arg20[%c0_43, %c0_44] : memref<1x32xf32, #tpu.memory_space<vmem>>, vector<1x32xf32>
    %96 = vector.broadcast %95 : vector<1x32xf32> to vector<8x32xf32>
    %97 = arith.addf %94, %96 : vector<8x32xf32>
    %98 = arith.truncf %97 : vector<8x32xf32> to vector<8x32xbf16>
    %c0_45 = arith.constant 0 : index
    %c0_46 = arith.constant 0 : index
    %99 = vector.load %arg10[%c0_45, %c0_46] : memref<32x32xbf16, #tpu.memory_space<vmem>>, vector<32x32xbf16>
    %cst_47 = arith.constant dense<0.000000e+00> : vector<8x32xf32>
    %100 = tpu.matmul %98, %99, %cst_47 {dimension_numbers = #tpu.dot_dimension_numbers<[1], [0], [0], [1], [0, 0, 1, 1], [], []>} : vector<8x32xbf16>, vector<32x32xbf16>, vector<8x32xf32> -> vector<8x32xf32>
    %101 = arith.truncf %9 : vector<16x32xf32> to vector<16x32xbf16>
    %c0_48 = arith.constant 0 : index
    %c0_49 = arith.constant 0 : index
    %102 = vector.load %arg11[%c0_48, %c0_49] : memref<32x64xbf16, #tpu.memory_space<vmem>>, vector<32x64xbf16>
    %cst_50 = arith.constant dense<0.000000e+00> : vector<16x64xf32>
    %103 = tpu.matmul %101, %102, %cst_50 {dimension_numbers = #tpu.dot_dimension_numbers<[1], [0], [0], [1], [0, 0, 1, 1], [], []>} : vector<16x32xbf16>, vector<32x64xbf16>, vector<16x64xf32> -> vector<16x64xf32>
    %104 = vector.extract_strided_slice %103 {offsets = [0, 0], sizes = [16, 32], strides = [1, 1]} : vector<16x64xf32> to vector<16x32xf32>
    %105 = vector.extract_strided_slice %103 {offsets = [0, 32], sizes = [16, 32], strides = [1, 1]} : vector<16x64xf32> to vector<16x32xf32>
    %106 = tpu.transpose %104, [1, 0] : vector<16x32xf32> -> vector<32x16xf32>
    %cst_51 = arith.constant dense<0.000000e+00> : vector<8x16xf32>
    %107 = tpu.matmul %100, %106, %cst_51 {dimension_numbers = #tpu.dot_dimension_numbers<[1], [0], [0], [1], [0, 0, 1, 1], [], []>} : vector<8x32xf32>, vector<32x16xf32>, vector<8x16xf32> -> vector<8x16xf32>
    %cst_52 = arith.constant dense<0xFF800000> : vector<8xf32>
    %108 = vector.multi_reduction <maximumf>, %107, %cst_52 [1] : vector<8x16xf32> to vector<8xf32>
    %109 = vector.shape_cast %108 : vector<8xf32> to vector<8x1xf32>
    %110 = vector.broadcast %109 : vector<8x1xf32> to vector<8x16xf32>
    %111 = arith.subf %107, %110 : vector<8x16xf32>
    %112 = math.exp %111 : vector<8x16xf32>
    %cst_53 = arith.constant dense<0.000000e+00> : vector<8xf32>
    %113 = vector.multi_reduction <add>, %112, %cst_53 [1] : vector<8x16xf32> to vector<8xf32>
    %114 = vector.shape_cast %113 : vector<8xf32> to vector<8x1xf32>
    %115 = tpu.reciprocal %114 {approx = true} : vector<8x1xf32> -> vector<8x1xf32>
    %116 = vector.broadcast %115 : vector<8x1xf32> to vector<8x16xf32>
    %117 = arith.mulf %112, %116 : vector<8x16xf32>
    %cst_54 = arith.constant dense<0.000000e+00> : vector<8x32xf32>
    %118 = tpu.matmul %117, %105, %cst_54 {dimension_numbers = #tpu.dot_dimension_numbers<[1], [0], [0], [1], [0, 0, 1, 1], [], []>} : vector<8x16xf32>, vector<16x32xf32>, vector<8x32xf32> -> vector<8x32xf32>
    %119 = arith.truncf %118 : vector<8x32xf32> to vector<8x32xbf16>
    %c0_55 = arith.constant 0 : index
    %c0_56 = arith.constant 0 : index
    %120 = vector.load %arg12[%c0_55, %c0_56] : memref<32x32xbf16, #tpu.memory_space<vmem>>, vector<32x32xbf16>
    %cst_57 = arith.constant dense<0.000000e+00> : vector<8x32xf32>
    %121 = tpu.matmul %119, %120, %cst_57 {dimension_numbers = #tpu.dot_dimension_numbers<[1], [0], [0], [1], [0, 0, 1, 1], [], []>} : vector<8x32xbf16>, vector<32x32xbf16>, vector<8x32xf32> -> vector<8x32xf32>
    %122 = arith.addf %73, %121 : vector<8x32xf32>
    %cst_58 = arith.constant dense<0.000000e+00> : vector<8xf32>
    %123 = vector.multi_reduction <add>, %122, %cst_58 [1] : vector<8x32xf32> to vector<8xf32>
    %124 = vector.shape_cast %123 : vector<8xf32> to vector<8x1xf32>
    %cst_59 = arith.constant 3.200000e+01 : f32
    %125 = vector.broadcast %cst_59 : f32 to vector<8x1xf32>
    %126 = arith.divf %124, %125 : vector<8x1xf32>
    %127 = vector.broadcast %126 : vector<8x1xf32> to vector<8x32xf32>
    %128 = arith.subf %122, %127 : vector<8x32xf32>
    %129 = arith.mulf %128, %128 : vector<8x32xf32>
    %cst_60 = arith.constant dense<0.000000e+00> : vector<8xf32>
    %130 = vector.multi_reduction <add>, %129, %cst_60 [1] : vector<8x32xf32> to vector<8xf32>
    %131 = vector.shape_cast %130 : vector<8xf32> to vector<8x1xf32>
    %cst_61 = arith.constant 3.200000e+01 : f32
    %132 = vector.broadcast %cst_61 : f32 to vector<8x1xf32>
    %133 = arith.divf %131, %132 : vector<8x1xf32>
    %134 = vector.broadcast %126 : vector<8x1xf32> to vector<8x32xf32>
    %135 = arith.subf %122, %134 : vector<8x32xf32>
    %cst_62 = arith.constant 9.99999974E-6 : f32
    %136 = vector.broadcast %cst_62 : f32 to vector<8x1xf32>
    %137 = arith.addf %133, %136 : vector<8x1xf32>
    %138 = math.rsqrt %137 : vector<8x1xf32>
    %139 = vector.broadcast %138 : vector<8x1xf32> to vector<8x32xf32>
    %140 = arith.mulf %135, %139 : vector<8x32xf32>
    %c0_63 = arith.constant 0 : index
    %c0_64 = arith.constant 0 : index
    %141 = vector.load %arg21[%c0_63, %c0_64] : memref<1x32xf32, #tpu.memory_space<vmem>>, vector<1x32xf32>
    %142 = vector.broadcast %141 : vector<1x32xf32> to vector<8x32xf32>
    %143 = arith.mulf %140, %142 : vector<8x32xf32>
    %c0_65 = arith.constant 0 : index
    %c0_66 = arith.constant 0 : index
    %144 = vector.load %arg22[%c0_65, %c0_66] : memref<1x32xf32, #tpu.memory_space<vmem>>, vector<1x32xf32>
    %145 = vector.broadcast %144 : vector<1x32xf32> to vector<8x32xf32>
    %146 = arith.addf %143, %145 : vector<8x32xf32>
    %147 = arith.truncf %146 : vector<8x32xf32> to vector<8x32xbf16>
    %c0_67 = arith.constant 0 : index
    %c0_68 = arith.constant 0 : index
    %148 = vector.load %arg13[%c0_67, %c0_68] : memref<32x128xbf16, #tpu.memory_space<vmem>>, vector<32x128xbf16>
    %cst_69 = arith.constant dense<0.000000e+00> : vector<8x128xf32>
    %149 = tpu.matmul %147, %148, %cst_69 {dimension_numbers = #tpu.dot_dimension_numbers<[1], [0], [0], [1], [0, 0, 1, 1], [], []>} : vector<8x32xbf16>, vector<32x128xbf16>, vector<8x128xf32> -> vector<8x128xf32>
    %c0_70 = arith.constant 0 : index
    %c0_71 = arith.constant 0 : index
    %150 = vector.load %arg14[%c0_70, %c0_71] : memref<1x128xf32, #tpu.memory_space<vmem>>, vector<1x128xf32>
    %151 = vector.broadcast %150 : vector<1x128xf32> to vector<8x128xf32>
    %152 = arith.addf %149, %151 : vector<8x128xf32>
    %cst_72 = arith.constant 0.000000e+00 : f32
    %153 = vector.broadcast %cst_72 : f32 to vector<8x128xf32>
    %154 = arith.maximumf %152, %153 : vector<8x128xf32>
    %155 = arith.truncf %154 : vector<8x128xf32> to vector<8x128xbf16>
    %c0_73 = arith.constant 0 : index
    %c0_74 = arith.constant 0 : index
    %156 = vector.load %arg15[%c0_73, %c0_74] : memref<128x32xbf16, #tpu.memory_space<vmem>>, vector<128x32xbf16>
    %cst_75 = arith.constant dense<0.000000e+00> : vector<8x32xf32>
    %157 = tpu.matmul %155, %156, %cst_75 {dimension_numbers = #tpu.dot_dimension_numbers<[1], [0], [0], [1], [0, 0, 1, 1], [], []>} : vector<8x128xbf16>, vector<128x32xbf16>, vector<8x32xf32> -> vector<8x32xf32>
    %c0_76 = arith.constant 0 : index
    %c0_77 = arith.constant 0 : index
    %158 = vector.load %arg16[%c0_76, %c0_77] : memref<1x32xf32, #tpu.memory_space<vmem>>, vector<1x32xf32>
    %159 = vector.broadcast %158 : vector<1x32xf32> to vector<8x32xf32>
    %160 = arith.addf %157, %159 : vector<8x32xf32>
    %161 = arith.addf %122, %160 : vector<8x32xf32>
    %162 = arith.truncf %161 : vector<8x32xf32> to vector<8x32xbf16>
    %c0_78 = arith.constant 0 : index
    %c0_79 = arith.constant 0 : index
    %163 = vector.load %arg23[%c0_78, %c0_79] : memref<32x128xbf16, #tpu.memory_space<vmem>>, vector<32x128xbf16>
    %cst_80 = arith.constant dense<0.000000e+00> : vector<8x128xf32>
    %164 = tpu.matmul %162, %163, %cst_80 {dimension_numbers = #tpu.dot_dimension_numbers<[1], [0], [0], [1], [0, 0, 1, 1], [], []>} : vector<8x32xbf16>, vector<32x128xbf16>, vector<8x128xf32> -> vector<8x128xf32>
    %c0_81 = arith.constant 0 : index
    %c0_82 = arith.constant 0 : index
    %165 = vector.load %arg24[%c0_81, %c0_82] : memref<1x128xf32, #tpu.memory_space<vmem>>, vector<1x128xf32>
    %166 = vector.broadcast %165 : vector<1x128xf32> to vector<8x128xf32>
    %167 = arith.addf %164, %166 : vector<8x128xf32>
    %c0_83 = arith.constant 0 : index
    %c0_84 = arith.constant 0 : index
    %c0_85 = arith.constant 0 : index
    %168 = vector.load %arg25[%c0_83, %c0_84, %c0_85] : memref<1x8x128xf32, #tpu.memory_space<vmem>>, vector<1x8x128xf32>
    %169 = vector.shape_cast %168 : vector<1x8x128xf32> to vector<8x128xf32>
    %170 = vector.shape_cast %167 : vector<8x128xf32> to vector<1x8x128xf32>
    tpu.vector_store %arg25[%c0_83, %c0_84, %c0_85], %170 {strides = array<i32>} : memref<1x8x128xf32, #tpu.memory_space<vmem>>, vector<1x8x128xf32>,
    return
  }
  func.func @transform_0(%arg0: i32) -> (i32, i32, i32) {
    %c0_i32 = arith.constant 0 : i32
    %c0_i32_0 = arith.constant 0 : i32
    %c0_i32_1 = arith.constant 0 : i32
    return %arg0, %c0_i32, %c0_i32_0 : i32, i32, i32
  }
  func.func @transform_1(%arg0: i32) -> (i32, i32, i32) {
    %c0_i32 = arith.constant 0 : i32
    %c0_i32_0 = arith.constant 0 : i32
    %c0_i32_1 = arith.constant 0 : i32
    return %arg0, %c0_i32, %c0_i32_0 : i32, i32, i32
  }
  func.func @transform_2(%arg0: i32) -> (i32, i32) {
    %c0_i32 = arith.constant 0 : i32
    %c0_i32_0 = arith.constant 0 : i32
    %c0_i32_1 = arith.constant 0 : i32
    return %c0_i32, %c0_i32_0 : i32, i32
  }
  func.func @transform_3(%arg0: i32) -> (i32, i32) {
    %c0_i32 = arith.constant 0 : i32
    %c0_i32_0 = arith.constant 0 : i32
    %c0_i32_1 = arith.constant 0 : i32
    return %c0_i32, %c0_i32_0 : i32, i32
  }
  func.func @transform_4(%arg0: i32) -> (i32, i32) {
    %c0_i32 = arith.constant 0 : i32
    %c0_i32_0 = arith.constant 0 : i32
    %c0_i32_1 = arith.constant 0 : i32
    return %c0_i32, %c0_i32_0 : i32, i32
  }
  func.func @transform_5(%arg0: i32) -> (i32, i32) {
    %c0_i32 = arith.constant 0 : i32
    %c0_i32_0 = arith.constant 0 : i32
    %c0_i32_1 = arith.constant 0 : i32
    return %c0_i32, %c0_i32_0 : i32, i32
  }
  func.func @transform_6(%arg0: i32) -> (i32, i32) {
    %c0_i32 = arith.constant 0 : i32
    %c0_i32_0 = arith.constant 0 : i32
    %c0_i32_1 = arith.constant 0 : i32
    return %c0_i32, %c0_i32_0 : i32, i32
  }
  func.func @transform_7(%arg0: i32) -> (i32, i32) {
    %c0_i32 = arith.constant 0 : i32
    %c0_i32_0 = arith.constant 0 : i32
    %c0_i32_1 = arith.constant 0 : i32
    return %c0_i32, %c0_i32_0 : i32, i32
  }
  func.func @transform_8(%arg0: i32) -> (i32, i32) {
    %c0_i32 = arith.constant 0 : i32
    %c0_i32_0 = arith.constant 0 : i32
    %c0_i32_1 = arith.constant 0 : i32
    return %c0_i32, %c0_i32_0 : i32, i32
  }
  func.func @transform_9(%arg0: i32) -> (i32, i32) {
    %c0_i32 = arith.constant 0 : i32
    %c0_i32_0 = arith.constant 0 : i32
    %c0_i32_1 = arith.constant 0 : i32
    return %c0_i32, %c0_i32_0 : i32, i32
  }
  func.func @transform_10(%arg0: i32) -> (i32, i32) {
    %c0_i32 = arith.constant 0 : i32
    %c0_i32_0 = arith.constant 0 : i32
    %c0_i32_1 = arith.constant 0 : i32
    return %c0_i32, %c0_i32_0 : i32, i32
  }
  func.func @transform_11(%arg0: i32) -> (i32, i32) {
    %c0_i32 = arith.constant 0 : i32
    %c0_i32_0 = arith.constant 0 : i32
    %c0_i32_1 = arith.constant 0 : i32
    return %c0_i32, %c0_i32_0 : i32, i32
  }
  func.func @transform_12(%arg0: i32) -> (i32, i32) {
    %c0_i32 = arith.constant 0 : i32
    %c0_i32_0 = arith.constant 0 : i32
    %c0_i32_1 = arith.constant 0 : i32
    return %c0_i32, %c0_i32_0 : i32, i32
  }
  func.func @transform_13(%arg0: i32) -> (i32, i32) {
    %c0_i32 = arith.constant 0 : i32
    %c0_i32_0 = arith.constant 0 : i32
    %c0_i32_1 = arith.constant 0 : i32
    return %c0_i32, %c0_i32_0 : i32, i32
  }
  func.func @transform_14(%arg0: i32) -> (i32, i32) {
    %c0_i32 = arith.constant 0 : i32
    %c0_i32_0 = arith.constant 0 : i32
    %c0_i32_1 = arith.constant 0 : i32
    return %c0_i32, %c0_i32_0 : i32, i32
  }
  func.func @transform_15(%arg0: i32) -> (i32, i32) {
    %c0_i32 = arith.constant 0 : i32
    %c0_i32_0 = arith.constant 0 : i32
    %c0_i32_1 = arith.constant 0 : i32
    return %c0_i32, %c0_i32_0 : i32, i32
  }
  func.func @transform_16(%arg0: i32) -> (i32, i32) {
    %c0_i32 = arith.constant 0 : i32
    %c0_i32_0 = arith.constant 0 : i32
    %c0_i32_1 = arith.constant 0 : i32
    return %c0_i32, %c0_i32_0 : i32, i32
  }
  func.func @transform_17(%arg0: i32) -> (i32, i32) {
    %c0_i32 = arith.constant 0 : i32
    %c0_i32_0 = arith.constant 0 : i32
    %c0_i32_1 = arith.constant 0 : i32
    return %c0_i32, %c0_i32_0 : i32, i32
  }
  func.func @transform_18(%arg0: i32) -> (i32, i32) {
    %c0_i32 = arith.constant 0 : i32
    %c0_i32_0 = arith.constant 0 : i32
    %c0_i32_1 = arith.constant 0 : i32
    return %c0_i32, %c0_i32_0 : i32, i32
  }
  func.func @transform_19(%arg0: i32) -> (i32, i32) {
    %c0_i32 = arith.constant 0 : i32
    %c0_i32_0 = arith.constant 0 : i32
    %c0_i32_1 = arith.constant 0 : i32
    return %c0_i32, %c0_i32_0 : i32, i32
  }
  func.func @transform_20(%arg0: i32) -> (i32, i32) {
    %c0_i32 = arith.constant 0 : i32
    %c0_i32_0 = arith.constant 0 : i32
    %c0_i32_1 = arith.constant 0 : i32
    return %c0_i32, %c0_i32_0 : i32, i32
  }
  func.func @transform_21(%arg0: i32) -> (i32, i32) {
    %c0_i32 = arith.constant 0 : i32
    %c0_i32_0 = arith.constant 0 : i32
    %c0_i32_1 = arith.constant 0 : i32
    return %c0_i32, %c0_i32_0 : i32, i32
  }
  func.func @transform_22(%arg0: i32) -> (i32, i32) {
    %c0_i32 = arith.constant 0 : i32
    %c0_i32_0 = arith.constant 0 : i32
    %c0_i32_1 = arith.constant 0 : i32
    return %c0_i32, %c0_i32_0 : i32, i32
  }
  func.func @transform_23(%arg0: i32) -> (i32, i32) {
    %c0_i32 = arith.constant 0 : i32
    %c0_i32_0 = arith.constant 0 : i32
    %c0_i32_1 = arith.constant 0 : i32
    return %c0_i32, %c0_i32_0 : i32, i32
  }
  func.func @transform_24(%arg0: i32) -> (i32, i32, i32) {
    %c0_i32 = arith.constant 0 : i32
    %c0_i32_0 = arith.constant 0 : i32
    %c0_i32_1 = arith.constant 0 : i32
    return %arg0, %c0_i32, %c0_i32_0 : i32, i32, i32
  }
}

</mosaic_0001>

<llo_original>
// kernel: encoder_decoder_forward.1
$region0: #{encoder_decoder_forward.1}
  #allocation0 [shape = 'u32[]', space=smem, size = 0x4, offset = 0x4, fixed_abs, tag = 'smem constant byte address 0x4 - core index']
  #allocation1 [shape = 'u32[144,128]{1,0:T(1,128)}', space=vmem, size = 0x12000, scoped, tag = 'internal scratch']
  %s0 = inlined_call_operand.vmem [shape: f32[2,16,64], index: 0, kind: input, shape index: {}]
  %s1 = inlined_call_operand.vmem [shape: s32[2,8,1], index: 1, kind: input, shape index: {}]
  %s2 = inlined_call_operand.vmem [shape: bf16[64,32], index: 2, kind: input, shape index: {}]
  %s3 = inlined_call_operand.vmem [shape: f32[1,32], index: 3, kind: input, shape index: {}]
  %s4 = inlined_call_operand.vmem [shape: f32[16,32], index: 4, kind: input, shape index: {}]
  %s5 = inlined_call_operand.vmem [shape: bf16[128,32], index: 5, kind: input, shape index: {}]
  %s6 = inlined_call_operand.vmem [shape: f32[8,32], index: 6, kind: input, shape index: {}]
  %s7 = inlined_call_operand.vmem [shape: bf16[32,96], index: 7, kind: input, shape index: {}]
  %s8 = inlined_call_operand.vmem [shape: bf16[32,32], index: 8, kind: input, shape index: {}]
  %s9 = inlined_call_operand.vmem [shape: bf16[32,32], index: 9, kind: input, shape index: {}]
  %s10 = inlined_call_operand.vmem [shape: bf16[32,64], index: 10, kind: input, shape index: {}]
  %s11 = inlined_call_operand.vmem [shape: bf16[32,32], index: 11, kind: input, shape index: {}]
  %s12 = inlined_call_operand.vmem [shape: bf16[32,128], index: 12, kind: input, shape index: {}]
  %s13 = inlined_call_operand.vmem [shape: f32[1,128], index: 13, kind: input, shape index: {}]
  %s14 = inlined_call_operand.vmem [shape: bf16[128,32], index: 14, kind: input, shape index: {}]
  %s15 = inlined_call_operand.vmem [shape: f32[1,32], index: 15, kind: input, shape index: {}]
  %s16 = inlined_call_operand.vmem [shape: f32[1,32], index: 16, kind: input, shape index: {}]
  %s17 = inlined_call_operand.vmem [shape: f32[1,32], index: 17, kind: input, shape index: {}]
  %s18 = inlined_call_operand.vmem [shape: f32[1,32], index: 18, kind: input, shape index: {}]
  %s19 = inlined_call_operand.vmem [shape: f32[1,32], index: 19, kind: input, shape index: {}]
  %s20 = inlined_call_operand.vmem [shape: f32[1,32], index: 20, kind: input, shape index: {}]
  %s21 = inlined_call_operand.vmem [shape: f32[1,32], index: 21, kind: input, shape index: {}]
  %s22 = inlined_call_operand.vmem [shape: bf16[32,128], index: 22, kind: input, shape index: {}]
  %s23 = inlined_call_operand.vmem [shape: f32[1,128], index: 23, kind: input, shape index: {}]
  %s24 = inlined_call_operand.hbm [shape: f32[2,8,128], index: 24, kind: output, shape index: {}]
  %s25 = sld [smem:[#allocation0]]
  $region129: #{encoder_decoder_forward.1} parent=0
    _
  %s27 = ssub.s32 1, %s25
  %s28 = scalar_select 0, %s27, %s25
  $region1: #{encoder_decoder_forward.1} parent=0
    #allocation2 [shape = 'u8[8192]{0}', space=vmem, size = 0x2000, scoped, tag = 'output window, operand 0']
    #allocation3 [shape = 's32[2]{0}', space=sflag, size = 0x8, scoped, tag = 'scoped memory for encoder_decoder_forward.1']
    %29 = vsyncpa [#allocation3], 0
    %s30 = scalar_lea.sflag [#allocation3], 1
    %31 = vsyncpa %s30, 0
    loop: start=0, step=1, limit=4
    $region2: #{encoder_decoder_forward.1} parent=1 // loop_pre_header
      _
    $region3: #{encoder_decoder_forward.1} parent=1 // loop_header
      %s33 = sphi 0, %s37
      %p34 = scmp.ge.s32.totalorder %s33, 4
      %s43 = sphi 0, %s45
      %s46 = sphi 0, %s43
      %s47 = sphi 0, %s46
      %s63 = sphi 0, %s47
      %s69 = sphi 0, %s71
      %s72 = sphi 0, %s69
      %s73 = sphi 0, %s72
      %s89 = sphi 0, %s73
      %s93 = sphi 0, %s93
      %s95 = sphi 0, %s93
      %s96 = sphi 0, %s95
      %s110 = sphi 0, %s96
      %s114 = sphi 0, %s114
      %s116 = sphi 0, %s114
      %s117 = sphi 0, %s116
      %s131 = sphi 0, %s117
      %s135 = sphi 0, %s135
      %s137 = sphi 0, %s135
      %s138 = sphi 0, %s137
      %s152 = sphi 0, %s138
      %s156 = sphi 0, %s156
      %s158 = sphi 0, %s156
      %s159 = sphi 0, %s158
      %s173 = sphi 0, %s159
      %s177 = sphi 0, %s177
      %s179 = sphi 0, %s177
      %s180 = sphi 0, %s179
      %s194 = sphi 0, %s180
      %s198 = sphi 0, %s198
      %s200 = sphi 0, %s198
      %s201 = sphi 0, %s200
      %s215 = sphi 0, %s201
      %s219 = sphi 0, %s219
      %s221 = sphi 0, %s219
      %s222 = sphi 0, %s221
      %s236 = sphi 0, %s222
      %s240 = sphi 0, %s240
      %s242 = sphi 0, %s240
      %s243 = sphi 0, %s242
      %s257 = sphi 0, %s243
      %s261 = sphi 0, %s261
      %s263 = sphi 0, %s261
      %s264 = sphi 0, %s263
      %s278 = sphi 0, %s264
      %s282 = sphi 0, %s282
      %s284 = sphi 0, %s282
      %s285 = sphi 0, %s284
      %s299 = sphi 0, %s285
      %s303 = sphi 0, %s303
      %s305 = sphi 0, %s303
      %s306 = sphi 0, %s305
      %s320 = sphi 0, %s306
      %s324 = sphi 0, %s324
      %s326 = sphi 0, %s324
      %s327 = sphi 0, %s326
      %s341 = sphi 0, %s327
      %s345 = sphi 0, %s345
      %s347 = sphi 0, %s345
      %s348 = sphi 0, %s347
      %s362 = sphi 0, %s348
      %s366 = sphi 0, %s366
      %s368 = sphi 0, %s366
      %s369 = sphi 0, %s368
      %s383 = sphi 0, %s369
      %s387 = sphi 0, %s387
      %s389 = sphi 0, %s387
      %s390 = sphi 0, %s389
      %s404 = sphi 0, %s390
      %s408 = sphi 0, %s408
      %s410 = sphi 0, %s408
      %s411 = sphi 0, %s410
      %s425 = sphi 0, %s411
      %s429 = sphi 0, %s429
      %s431 = sphi 0, %s429
      %s432 = sphi 0, %s431
      %s446 = sphi 0, %s432
      %s450 = sphi 0, %s450
      %s452 = sphi 0, %s450
      %s453 = sphi 0, %s452
      %s467 = sphi 0, %s453
      %s471 = sphi 0, %s471
      %s473 = sphi 0, %s471
      %s474 = sphi 0, %s473
      %s488 = sphi 0, %s474
      %s492 = sphi 0, %s492
      %s494 = sphi 0, %s492
      %s495 = sphi 0, %s494
      %s509 = sphi 0, %s495
      %s513 = sphi 0, %s513
      %s515 = sphi 0, %s513
      %s516 = sphi 0, %s515
      %s530 = sphi 0, %s516
      %s534 = sphi 0, %s534
      %s536 = sphi 0, %s534
      %s537 = sphi 0, %s536
      %s551 = sphi 0, %s537
      %s557 = sphi 0, %s559
      %s560 = sphi 0, %s557
      %s561 = sphi 0, %s560
      %s577 = sphi 0, %s561
    $region4: #{encoder_decoder_forward.1} parent=1 // loop_header_branch
      %36 = sbr.rel (%p34) target = $region8
    $region5: #{encoder_decoder_forward.1} parent=1 // loop_body
      %s38 = ssub.s32 %s33, 1
      %s39 = ssub.s32 %s33, 2
      %s40 = sadd.s32 %s33, 1
      %s41 = ssub.s32 %s33, %s40
      %p42 = scmp.eq.s32.totalorder %s41, 0
      %s44 = sadd.s32 %s43, 1
      %s45 = scalar_select %p42, %s43, %s44
      %p48 = pneg %p42
      %p49 = scmp.eq.s32.totalorder %s33, 1
      %p50 = por %p48, %p49
      %p51 = scmp.ne.s32.totalorder %s43, %s46
      %p52 = scmp.eq.s32.totalorder %s33, 0
      %p53 = por %p51, %p52
      %p54 = scmp.ne.s32.totalorder %s43, %s46
      %p55 = scmp.eq.s32.totalorder %s38, 1
      %p56 = por %p54, %p55
      %p57 = scmp.ne.s32.totalorder %s46, %s47
      %p58 = scmp.eq.s32.totalorder %s38, 0
      %p59 = por %p57, %p58
      %p60 = scmp.ne.s32.totalorder %s46, %s47
      %p61 = scmp.eq.s32.totalorder %s39, 1
      %p62 = por %p60, %p61
      %p64 = scmp.ne.s32.totalorder %s47, %s63
      %p65 = scmp.eq.s32.totalorder %s39, 0
      %p66 = por %p64, %p65
      %s67 = ssub.s32 %s33, %s40
      %p68 = scmp.eq.s32.totalorder %s67, 0
      %s70 = sadd.s32 %s69, 1
      %s71 = scalar_select %p68, %s69, %s70
      %p74 = pneg %p68
      %p75 = scmp.eq.s32.totalorder %s33, 1
      %p76 = por %p74, %p75
      %p77 = scmp.ne.s32.totalorder %s69, %s72
      %p78 = scmp.eq.s32.totalorder %s33, 0
      %p79 = por %p77, %p78
      %p80 = scmp.ne.s32.totalorder %s69, %s72
      %p81 = scmp.eq.s32.totalorder %s38, 1
      %p82 = por %p80, %p81
      %p83 = scmp.ne.s32.totalorder %s72, %s73
      %p84 = scmp.eq.s32.totalorder %s38, 0
      %p85 = por %p83, %p84
      %p86 = scmp.ne.s32.totalorder %s72, %s73
      %p87 = scmp.eq.s32.totalorder %s39, 1
      %p88 = por %p86, %p87
      %p90 = scmp.ne.s32.totalorder %s73, %s89
      %p91 = scmp.eq.s32.totalorder %s39, 0
      %p92 = por %p90, %p91
      %s94 = sadd.s32 %s93, 1
      %p97 = scmp.eq.s32.totalorder %s33, 1
      %p98 = scmp.ne.s32.totalorder %s93, %s95
      %p99 = scmp.eq.s32.totalorder %s33, 0
      %p100 = por %p98, %p99
      %p101 = scmp.ne.s32.totalorder %s93, %s95
      %p102 = scmp.eq.s32.totalorder %s38, 1
      %p103 = por %p101, %p102
      %p104 = scmp.ne.s32.totalorder %s95, %s96
      %p105 = scmp.eq.s32.totalorder %s38, 0
      %p106 = por %p104, %p105
      %p107 = scmp.ne.s32.totalorder %s95, %s96
      %p108 = scmp.eq.s32.totalorder %s39, 1
      %p109 = por %p107, %p108
      %p111 = scmp.ne.s32.totalorder %s96, %s110
      %p112 = scmp.eq.s32.totalorder %s39, 0
      %p113 = por %p111, %p112
      %s115 = sadd.s32 %s114, 1
      %p118 = scmp.eq.s32.totalorder %s33, 1
      %p119 = scmp.ne.s32.totalorder %s114, %s116
      %p120 = scmp.eq.s32.totalorder %s33, 0
      %p121 = por %p119, %p120
      %p122 = scmp.ne.s32.totalorder %s114, %s116
      %p123 = scmp.eq.s32.totalorder %s38, 1
      %p124 = por %p122, %p123
      %p125 = scmp.ne.s32.totalorder %s116, %s117
      %p126 = scmp.eq.s32.totalorder %s38, 0
      %p127 = por %p125, %p126
      %p128 = scmp.ne.s32.totalorder %s116, %s117
      %p129 = scmp.eq.s32.totalorder %s39, 1
      %p130 = por %p128, %p129
      %p132 = scmp.ne.s32.totalorder %s117, %s131
      %p133 = scmp.eq.s32.totalorder %s39, 0
      %p134 = por %p132, %p133
      %s136 = sadd.s32 %s135, 1
      %p139 = scmp.eq.s32.totalorder %s33, 1
      %p140 = scmp.ne.s32.totalorder %s135, %s137
      %p141 = scmp.eq.s32.totalorder %s33, 0
      %p142 = por %p140, %p141
      %p143 = scmp.ne.s32.totalorder %s135, %s137
      %p144 = scmp.eq.s32.totalorder %s38, 1
      %p145 = por %p143, %p144
      %p146 = scmp.ne.s32.totalorder %s137, %s138
      %p147 = scmp.eq.s32.totalorder %s38, 0
      %p148 = por %p146, %p147
      %p149 = scmp.ne.s32.totalorder %s137, %s138
      %p150 = scmp.eq.s32.totalorder %s39, 1
      %p151 = por %p149, %p150
      %p153 = scmp.ne.s32.totalorder %s138, %s152
      %p154 = scmp.eq.s32.totalorder %s39, 0
      %p155 = por %p153, %p154
      %s157 = sadd.s32 %s156, 1
      %p160 = scmp.eq.s32.totalorder %s33, 1
      %p161 = scmp.ne.s32.totalorder %s156, %s158
      %p162 = scmp.eq.s32.totalorder %s33, 0
      %p163 = por %p161, %p162
      %p164 = scmp.ne.s32.totalorder %s156, %s158
      %p165 = scmp.eq.s32.totalorder %s38, 1
      %p166 = por %p164, %p165
      %p167 = scmp.ne.s32.totalorder %s158, %s159
      %p168 = scmp.eq.s32.totalorder %s38, 0
      %p169 = por %p167, %p168
      %p170 = scmp.ne.s32.totalorder %s158, %s159
      %p171 = scmp.eq.s32.totalorder %s39, 1
      %p172 = por %p170, %p171
      %p174 = scmp.ne.s32.totalorder %s159, %s173
      %p175 = scmp.eq.s32.totalorder %s39, 0
      %p176 = por %p174, %p175
      %s178 = sadd.s32 %s177, 1
      %p181 = scmp.eq.s32.totalorder %s33, 1
      %p182 = scmp.ne.s32.totalorder %s177, %s179
      %p183 = scmp.eq.s32.totalorder %s33, 0
      %p184 = por %p182, %p183
      %p185 = scmp.ne.s32.totalorder %s177, %s179
      %p186 = scmp.eq.s32.totalorder %s38, 1
      %p187 = por %p185, %p186
      %p188 = scmp.ne.s32.totalorder %s179, %s180
      %p189 = scmp.eq.s32.totalorder %s38, 0
      %p190 = por %p188, %p189
      %p191 = scmp.ne.s32.totalorder %s179, %s180
      %p192 = scmp.eq.s32.totalorder %s39, 1
      %p193 = por %p191, %p192
      %p195 = scmp.ne.s32.totalorder %s180, %s194
      %p196 = scmp.eq.s32.totalorder %s39, 0
      %p197 = por %p195, %p196
      %s199 = sadd.s32 %s198, 1
      %p202 = scmp.eq.s32.totalorder %s33, 1
      %p203 = scmp.ne.s32.totalorder %s198, %s200
      %p204 = scmp.eq.s32.totalorder %s33, 0
      %p205 = por %p203, %p204
      %p206 = scmp.ne.s32.totalorder %s198, %s200
      %p207 = scmp.eq.s32.totalorder %s38, 1
      %p208 = por %p206, %p207
      %p209 = scmp.ne.s32.totalorder %s200, %s201
      %p210 = scmp.eq.s32.totalorder %s38, 0
      %p211 = por %p209, %p210
      %p212 = scmp.ne.s32.totalorder %s200, %s201
      %p213 = scmp.eq.s32.totalorder %s39, 1
      %p214 = por %p212, %p213
      %p216 = scmp.ne.s32.totalorder %s201, %s215
      %p217 = scmp.eq.s32.totalorder %s39, 0
      %p218 = por %p216, %p217
      %s220 = sadd.s32 %s219, 1
      %p223 = scmp.eq.s32.totalorder %s33, 1
      %p224 = scmp.ne.s32.totalorder %s219, %s221
      %p225 = scmp.eq.s32.totalorder %s33, 0
      %p226 = por %p224, %p225
      %p227 = scmp.ne.s32.totalorder %s219, %s221
      %p228 = scmp.eq.s32.totalorder %s38, 1
      %p229 = por %p227, %p228
      %p230 = scmp.ne.s32.totalorder %s221, %s222
      %p231 = scmp.eq.s32.totalorder %s38, 0
      %p232 = por %p230, %p231
      %p233 = scmp.ne.s32.totalorder %s221, %s222
      %p234 = scmp.eq.s32.totalorder %s39, 1
      %p235 = por %p233, %p234
      %p237 = scmp.ne.s32.totalorder %s222, %s236
      %p238 = scmp.eq.s32.totalorder %s39, 0
      %p239 = por %p237, %p238
      %s241 = sadd.s32 %s240, 1
      %p244 = scmp.eq.s32.totalorder %s33, 1
      %p245 = scmp.ne.s32.totalorder %s240, %s242
      %p246 = scmp.eq.s32.totalorder %s33, 0
      %p247 = por %p245, %p246
      %p248 = scmp.ne.s32.totalorder %s240, %s242
      %p249 = scmp.eq.s32.totalorder %s38, 1
      %p250 = por %p248, %p249
      %p251 = scmp.ne.s32.totalorder %s242, %s243
      %p252 = scmp.eq.s32.totalorder %s38, 0
      %p253 = por %p251, %p252
      %p254 = scmp.ne.s32.totalorder %s242, %s243
      %p255 = scmp.eq.s32.totalorder %s39, 1
      %p256 = por %p254, %p255
      %p258 = scmp.ne.s32.totalorder %s243, %s257
      %p259 = scmp.eq.s32.totalorder %s39, 0
      %p260 = por %p258, %p259
      %s262 = sadd.s32 %s261, 1
      %p265 = scmp.eq.s32.totalorder %s33, 1
      %p266 = scmp.ne.s32.totalorder %s261, %s263
      %p267 = scmp.eq.s32.totalorder %s33, 0
      %p268 = por %p266, %p267
      %p269 = scmp.ne.s32.totalorder %s261, %s263
      %p270 = scmp.eq.s32.totalorder %s38, 1
      %p271 = por %p269, %p270
      %p272 = scmp.ne.s32.totalorder %s263, %s264
      %p273 = scmp.eq.s32.totalorder %s38, 0
      %p274 = por %p272, %p273
      %p275 = scmp.ne.s32.totalorder %s263, %s264
      %p276 = scmp.eq.s32.totalorder %s39, 1
      %p277 = por %p275, %p276
      %p279 = scmp.ne.s32.totalorder %s264, %s278
      %p280 = scmp.eq.s32.totalorder %s39, 0
      %p281 = por %p279, %p280
      %s283 = sadd.s32 %s282, 1
      %p286 = scmp.eq.s32.totalorder %s33, 1
      %p287 = scmp.ne.s32.totalorder %s282, %s284
      %p288 = scmp.eq.s32.totalorder %s33, 0
      %p289 = por %p287, %p288
      %p290 = scmp.ne.s32.totalorder %s282, %s284
      %p291 = scmp.eq.s32.totalorder %s38, 1
      %p292 = por %p290, %p291
      %p293 = scmp.ne.s32.totalorder %s284, %s285
      %p294 = scmp.eq.s32.totalorder %s38, 0
      %p295 = por %p293, %p294
      %p296 = scmp.ne.s32.totalorder %s284, %s285
      %p297 = scmp.eq.s32.totalorder %s39, 1
      %p298 = por %p296, %p297
      %p300 = scmp.ne.s32.totalorder %s285, %s299
      %p301 = scmp.eq.s32.totalorder %s39, 0
      %p302 = por %p300, %p301
      %s304 = sadd.s32 %s303, 1
      %p307 = scmp.eq.s32.totalorder %s33, 1
      %p308 = scmp.ne.s32.totalorder %s303, %s305
      %p309 = scmp.eq.s32.totalorder %s33, 0
      %p310 = por %p308, %p309
      %p311 = scmp.ne.s32.totalorder %s303, %s305
      %p312 = scmp.eq.s32.totalorder %s38, 1
      %p313 = por %p311, %p312
      %p314 = scmp.ne.s32.totalorder %s305, %s306
      %p315 = scmp.eq.s32.totalorder %s38, 0
      %p316 = por %p314, %p315
      %p317 = scmp.ne.s32.totalorder %s305, %s306
      %p318 = scmp.eq.s32.totalorder %s39, 1
      %p319 = por %p317, %p318
      %p321 = scmp.ne.s32.totalorder %s306, %s320
      %p322 = scmp.eq.s32.totalorder %s39, 0
      %p323 = por %p321, %p322
      %s325 = sadd.s32 %s324, 1
      %p328 = scmp.eq.s32.totalorder %s33, 1
      %p329 = scmp.ne.s32.totalorder %s324, %s326
      %p330 = scmp.eq.s32.totalorder %s33, 0
      %p331 = por %p329, %p330
      %p332 = scmp.ne.s32.totalorder %s324, %s326
      %p333 = scmp.eq.s32.totalorder %s38, 1
      %p334 = por %p332, %p333
      %p335 = scmp.ne.s32.totalorder %s326, %s327
      %p336 = scmp.eq.s32.totalorder %s38, 0
      %p337 = por %p335, %p336
      %p338 = scmp.ne.s32.totalorder %s326, %s327
      %p339 = scmp.eq.s32.totalorder %s39, 1
      %p340 = por %p338, %p339
      %p342 = scmp.ne.s32.totalorder %s327, %s341
      %p343 = scmp.eq.s32.totalorder %s39, 0
      %p344 = por %p342, %p343
      %s346 = sadd.s32 %s345, 1
      %p349 = scmp.eq.s32.totalorder %s33, 1
      %p350 = scmp.ne.s32.totalorder %s345, %s347
      %p351 = scmp.eq.s32.totalorder %s33, 0
      %p352 = por %p350, %p351
      %p353 = scmp.ne.s32.totalorder %s345, %s347
      %p354 = scmp.eq.s32.totalorder %s38, 1
      %p355 = por %p353, %p354
      %p356 = scmp.ne.s32.totalorder %s347, %s348
      %p357 = scmp.eq.s32.totalorder %s38, 0
      %p358 = por %p356, %p357
      %p359 = scmp.ne.s32.totalorder %s347, %s348
      %p360 = scmp.eq.s32.totalorder %s39, 1
      %p361 = por %p359, %p360
      %p363 = scmp.ne.s32.totalorder %s348, %s362
      %p364 = scmp.eq.s32.totalorder %s39, 0
      %p365 = por %p363, %p364
      %s367 = sadd.s32 %s366, 1
      %p370 = scmp.eq.s32.totalorder %s33, 1
      %p371 = scmp.ne.s32.totalorder %s366, %s368
      %p372 = scmp.eq.s32.totalorder %s33, 0
      %p373 = por %p371, %p372
      %p374 = scmp.ne.s32.totalorder %s366, %s368
      %p375 = scmp.eq.s32.totalorder %s38, 1
      %p376 = por %p374, %p375
      %p377 = scmp.ne.s32.totalorder %s368, %s369
      %p378 = scmp.eq.s32.totalorder %s38, 0
      %p379 = por %p377, %p378
      %p380 = scmp.ne.s32.totalorder %s368, %s369
      %p381 = scmp.eq.s32.totalorder %s39, 1
      %p382 = por %p380, %p381
      %p384 = scmp.ne.s32.totalorder %s369, %s383
      %p385 = scmp.eq.s32.totalorder %s39, 0
      %p386 = por %p384, %p385
      %s388 = sadd.s32 %s387, 1
      %p391 = scmp.eq.s32.totalorder %s33, 1
      %p392 = scmp.ne.s32.totalorder %s387, %s389
      %p393 = scmp.eq.s32.totalorder %s33, 0
      %p394 = por %p392, %p393
      %p395 = scmp.ne.s32.totalorder %s387, %s389
      %p396 = scmp.eq.s32.totalorder %s38, 1
      %p397 = por %p395, %p396
      %p398 = scmp.ne.s32.totalorder %s389, %s390
      %p399 = scmp.eq.s32.totalorder %s38, 0
      %p400 = por %p398, %p399
      %p401 = scmp.ne.s32.totalorder %s389, %s390
      %p402 = scmp.eq.s32.totalorder %s39, 1
      %p403 = por %p401, %p402
      %p405 = scmp.ne.s32.totalorder %s390, %s404
      %p406 = scmp.eq.s32.totalorder %s39, 0
      %p407 = por %p405, %p406
      %s409 = sadd.s32 %s408, 1
      %p412 = scmp.eq.s32.totalorder %s33, 1
      %p413 = scmp.ne.s32.totalorder %s408, %s410
      %p414 = scmp.eq.s32.totalorder %s33, 0
      %p415 = por %p413, %p414
      %p416 = scmp.ne.s32.totalorder %s408, %s410
      %p417 = scmp.eq.s32.totalorder %s38, 1
      %p418 = por %p416, %p417
      %p419 = scmp.ne.s32.totalorder %s410, %s411
      %p420 = scmp.eq.s32.totalorder %s38, 0
      %p421 = por %p419, %p420
      %p422 = scmp.ne.s32.totalorder %s410, %s411
      %p423 = scmp.eq.s32.totalorder %s39, 1
      %p424 = por %p422, %p423
      %p426 = scmp.ne.s32.totalorder %s411, %s425
      %p427 = scmp.eq.s32.totalorder %s39, 0
      %p428 = por %p426, %p427
      %s430 = sadd.s32 %s429, 1
      %p433 = scmp.eq.s32.totalorder %s33, 1
      %p434 = scmp.ne.s32.totalorder %s429, %s431
      %p435 = scmp.eq.s32.totalorder %s33, 0
      %p436 = por %p434, %p435
      %p437 = scmp.ne.s32.totalorder %s429, %s431
      %p438 = scmp.eq.s32.totalorder %s38, 1
      %p439 = por %p437, %p438
      %p440 = scmp.ne.s32.totalorder %s431, %s432
      %p441 = scmp.eq.s32.totalorder %s38, 0
      %p442 = por %p440, %p441
      %p443 = scmp.ne.s32.totalorder %s431, %s432
      %p444 = scmp.eq.s32.totalorder %s39, 1
      %p445 = por %p443, %p444
      %p447 = scmp.ne.s32.totalorder %s432, %s446
      %p448 = scmp.eq.s32.totalorder %s39, 0
      %p449 = por %p447, %p448
      %s451 = sadd.s32 %s450, 1
      %p454 = scmp.eq.s32.totalorder %s33, 1
      %p455 = scmp.ne.s32.totalorder %s450, %s452
      %p456 = scmp.eq.s32.totalorder %s33, 0
      %p457 = por %p455, %p456
      %p458 = scmp.ne.s32.totalorder %s450, %s452
      %p459 = scmp.eq.s32.totalorder %s38, 1
      %p460 = por %p458, %p459
      %p461 = scmp.ne.s32.totalorder %s452, %s453
      %p462 = scmp.eq.s32.totalorder %s38, 0
      %p463 = por %p461, %p462
      %p464 = scmp.ne.s32.totalorder %s452, %s453
      %p465 = scmp.eq.s32.totalorder %s39, 1
      %p466 = por %p464, %p465
      %p468 = scmp.ne.s32.totalorder %s453, %s467
      %p469 = scmp.eq.s32.totalorder %s39, 0
      %p470 = por %p468, %p469
      %s472 = sadd.s32 %s471, 1
      %p475 = scmp.eq.s32.totalorder %s33, 1
      %p476 = scmp.ne.s32.totalorder %s471, %s473
      %p477 = scmp.eq.s32.totalorder %s33, 0
      %p478 = por %p476, %p477
      %p479 = scmp.ne.s32.totalorder %s471, %s473
      %p480 = scmp.eq.s32.totalorder %s38, 1
      %p481 = por %p479, %p480
      %p482 = scmp.ne.s32.totalorder %s473, %s474
      %p483 = scmp.eq.s32.totalorder %s38, 0
      %p484 = por %p482, %p483
      %p485 = scmp.ne.s32.totalorder %s473, %s474
      %p486 = scmp.eq.s32.totalorder %s39, 1
      %p487 = por %p485, %p486
      %p489 = scmp.ne.s32.totalorder %s474, %s488
      %p490 = scmp.eq.s32.totalorder %s39, 0
      %p491 = por %p489, %p490
      %s493 = sadd.s32 %s492, 1
      %p496 = scmp.eq.s32.totalorder %s33, 1
      %p497 = scmp.ne.s32.totalorder %s492, %s494
      %p498 = scmp.eq.s32.totalorder %s33, 0
      %p499 = por %p497, %p498
      %p500 = scmp.ne.s32.totalorder %s492, %s494
      %p501 = scmp.eq.s32.totalorder %s38, 1
      %p502 = por %p500, %p501
      %p503 = scmp.ne.s32.totalorder %s494, %s495
      %p504 = scmp.eq.s32.totalorder %s38, 0
      %p505 = por %p503, %p504
      %p506 = scmp.ne.s32.totalorder %s494, %s495
      %p507 = scmp.eq.s32.totalorder %s39, 1
      %p508 = por %p506, %p507
      %p510 = scmp.ne.s32.totalorder %s495, %s509
      %p511 = scmp.eq.s32.totalorder %s39, 0
      %p512 = por %p510, %p511
      %s514 = sadd.s32 %s513, 1
      %p517 = scmp.eq.s32.totalorder %s33, 1
      %p518 = scmp.ne.s32.totalorder %s513, %s515
      %p519 = scmp.eq.s32.totalorder %s33, 0
      %p520 = por %p518, %p519
      %p521 = scmp.ne.s32.totalorder %s513, %s515
      %p522 = scmp.eq.s32.totalorder %s38, 1
      %p523 = por %p521, %p522
      %p524 = scmp.ne.s32.totalorder %s515, %s516
      %p525 = scmp.eq.s32.totalorder %s38, 0
      %p526 = por %p524, %p525
      %p527 = scmp.ne.s32.totalorder %s515, %s516
      %p528 = scmp.eq.s32.totalorder %s39, 1
      %p529 = por %p527, %p528
      %p531 = scmp.ne.s32.totalorder %s516, %s530
      %p532 = scmp.eq.s32.totalorder %s39, 0
      %p533 = por %p531, %p532
      %s535 = sadd.s32 %s534, 1
      %p538 = scmp.eq.s32.totalorder %s33, 1
      %p539 = scmp.ne.s32.totalorder %s534, %s536
      %p540 = scmp.eq.s32.totalorder %s33, 0
      %p541 = por %p539, %p540
      %p542 = scmp.ne.s32.totalorder %s534, %s536
      %p543 = scmp.eq.s32.totalorder %s38, 1
      %p544 = por %p542, %p543
      %p545 = scmp.ne.s32.totalorder %s536, %s537
      %p546 = scmp.eq.s32.totalorder %s38, 0
      %p547 = por %p545, %p546
      %p548 = scmp.ne.s32.totalorder %s536, %s537
      %p549 = scmp.eq.s32.totalorder %s39, 1
      %p550 = por %p548, %p549
      %p552 = scmp.ne.s32.totalorder %s537, %s551
      %p553 = scmp.eq.s32.totalorder %s39, 0
      %p554 = por %p552, %p553
      %s555 = ssub.s32 %s33, %s40
      %p556 = scmp.eq.s32.totalorder %s555, 0
      %s558 = sadd.s32 %s557, 1
      %s559 = scalar_select %p556, %s557, %s558
      %p562 = pneg %p556
      %p563 = scmp.eq.s32.totalorder %s33, 1
      %p564 = por %p562, %p563
      %p565 = scmp.ne.s32.totalorder %s557, %s560
      %p566 = scmp.eq.s32.totalorder %s33, 0
      %p567 = por %p565, %p566
      %p568 = scmp.ne.s32.totalorder %s557, %s560
      %p569 = scmp.eq.s32.totalorder %s38, 1
      %p570 = por %p568, %p569
      %p571 = scmp.ne.s32.totalorder %s560, %s561
      %p572 = scmp.eq.s32.totalorder %s38, 0
      %p573 = por %p571, %p572
      %p574 = scmp.ne.s32.totalorder %s560, %s561
      %p575 = scmp.eq.s32.totalorder %s39, 1
      %p576 = por %p574, %p575
      %p578 = scmp.ne.s32.totalorder %s561, %s577
      %p579 = scmp.eq.s32.totalorder %s39, 0
      %p580 = por %p578, %p579
      %p581 = scmp.le.s32.totalorder 1, %s33
      %p582 = scmp.lt.s32.totalorder %s33, 3
      %p583 = pnand %p581, %p582
      %p584 = pneg %p583
      // Predicated region
      $region9: #{encoder_decoder_forward.1} parent=5 // pred_check
        _
      $region10: #{encoder_decoder_forward.1} parent=5 // pred_check_branch
        %586 = sbr.rel (%p583) target = $region12
      $region11: #{encoder_decoder_forward.1} parent=5 // pred_region
        %s587 = ssub.s32 %s33, 1
        // Predicated region
        $region13: #{encoder_decoder_forward.1} parent=11 // pred_check
          %p588 = pneg %p106
        $region14: #{encoder_decoder_forward.1} parent=11 // pred_check_branch
          %590 = sbr.rel (%p588) target = $region16
        $region15: #{encoder_decoder_forward.1} parent=11 // pred_region
          _
        $region16: #{encoder_decoder_forward.1} parent=11 // pred_fallthru
          _
        // Predicated region
        $region17: #{encoder_decoder_forward.1} parent=11 // pred_check
          %p591 = pneg %p127
        $region18: #{encoder_decoder_forward.1} parent=11 // pred_check_branch
          %593 = sbr.rel (%p591) target = $region20
        $region19: #{encoder_decoder_forward.1} parent=11 // pred_region
          _
        $region20: #{encoder_decoder_forward.1} parent=11 // pred_fallthru
          _
        // Predicated region
        $region21: #{encoder_decoder_forward.1} parent=11 // pred_check
          %p594 = pneg %p148
        $region22: #{encoder_decoder_forward.1} parent=11 // pred_check_branch
          %596 = sbr.rel (%p594) target = $region24
        $region23: #{encoder_decoder_forward.1} parent=11 // pred_region
          _
        $region24: #{encoder_decoder_forward.1} parent=11 // pred_fallthru
          _
        // Predicated region
        $region25: #{encoder_decoder_forward.1} parent=11 // pred_check
          %p597 = pneg %p169
        $region26: #{encoder_decoder_forward.1} parent=11 // pred_check_branch
          %599 = sbr.rel (%p597) target = $region28
        $region27: #{encoder_decoder_forward.1} parent=11 // pred_region
          _
        $region28: #{encoder_decoder_forward.1} parent=11 // pred_fallthru
          _
        // Predicated region
        $region29: #{encoder_decoder_forward.1} parent=11 // pred_check
          %p600 = pneg %p190
        $region30: #{encoder_decoder_forward.1} parent=11 // pred_check_branch
          %602 = sbr.rel (%p600) target = $region32
        $region31: #{encoder_decoder_forward.1} parent=11 // pred_region
          _
        $region32: #{encoder_decoder_forward.1} parent=11 // pred_fallthru
          _
        // Predicated region
        $region33: #{encoder_decoder_forward.1} parent=11 // pred_check
          %p603 = pneg %p211
        $region34: #{encoder_decoder_forward.1} parent=11 // pred_check_branch
          %605 = sbr.rel (%p603) target = $region36
        $region35: #{encoder_decoder_forward.1} parent=11 // pred_region
          _
        $region36: #{encoder_decoder_forward.1} parent=11 // pred_fallthru
          _
        // Predicated region
        $region37: #{encoder_decoder_forward.1} parent=11 // pred_check
          %p606 = pneg %p232
        $region38: #{encoder_decoder_forward.1} parent=11 // pred_check_branch
          %608 = sbr.rel (%p606) target = $region40
        $region39: #{encoder_decoder_forward.1} parent=11 // pred_region
          _
        $region40: #{encoder_decoder_forward.1} parent=11 // pred_fallthru
          _
        // Predicated region
        $region41: #{encoder_decoder_forward.1} parent=11 // pred_check
          %p609 = pneg %p253
        $region42: #{encoder_decoder_forward.1} parent=11 // pred_check_branch
          %611 = sbr.rel (%p609) target = $region44
        $region43: #{encoder_decoder_forward.1} parent=11 // pred_region
          _
        $region44: #{encoder_decoder_forward.1} parent=11 // pred_fallthru
          _
        // Predicated region
        $region45: #{encoder_decoder_forward.1} parent=11 // pred_check
          %p612 = pneg %p274
        $region46: #{encoder_decoder_forward.1} parent=11 // pred_check_branch
          %614 = sbr.rel (%p612) target = $region48
        $region47: #{encoder_decoder_forward.1} parent=11 // pred_region
          _
        $region48: #{encoder_decoder_forward.1} parent=11 // pred_fallthru
          _
        // Predicated region
        $region49: #{encoder_decoder_forward.1} parent=11 // pred_check
          %p615 = pneg %p295
        $region50: #{encoder_decoder_forward.1} parent=11 // pred_check_branch
          %617 = sbr.rel (%p615) target = $region52
        $region51: #{encoder_decoder_forward.1} parent=11 // pred_region
          _
        $region52: #{encoder_decoder_forward.1} parent=11 // pred_fallthru
          _
        // Predicated region
        $region53: #{encoder_decoder_forward.1} parent=11 // pred_check
          %p618 = pneg %p316
        $region54: #{encoder_decoder_forward.1} parent=11 // pred_check_branch
          %620 = sbr.rel (%p618) target = $region56
        $region55: #{encoder_decoder_forward.1} parent=11 // pred_region
          _
        $region56: #{encoder_decoder_forward.1} parent=11 // pred_fallthru
          _
        // Predicated region
        $region57: #{encoder_decoder_forward.1} parent=11 // pred_check
          %p621 = pneg %p337
        $region58: #{encoder_decoder_forward.1} parent=11 // pred_check_branch
          %623 = sbr.rel (%p621) target = $region60
        $region59: #{encoder_decoder_forward.1} parent=11 // pred_region
          _
        $region60: #{encoder_decoder_forward.1} parent=11 // pred_fallthru
          _
        // Predicated region
        $region61: #{encoder_decoder_forward.1} parent=11 // pred_check
          %p624 = pneg %p358
        $region62: #{encoder_decoder_forward.1} parent=11 // pred_check_branch
          %626 = sbr.rel (%p624) target = $region64
        $region63: #{encoder_decoder_forward.1} parent=11 // pred_region
          _
        $region64: #{encoder_decoder_forward.1} parent=11 // pred_fallthru
          _
        // Predicated region
        $region65: #{encoder_decoder_forward.1} parent=11 // pred_check
          %p627 = pneg %p379
        $region66: #{encoder_decoder_forward.1} parent=11 // pred_check_branch
          %629 = sbr.rel (%p627) target = $region68
        $region67: #{encoder_decoder_forward.1} parent=11 // pred_region
          _
        $region68: #{encoder_decoder_forward.1} parent=11 // pred_fallthru
          _
        // Predicated region
        $region69: #{encoder_decoder_forward.1} parent=11 // pred_check
          %p630 = pneg %p400
        $region70: #{encoder_decoder_forward.1} parent=11 // pred_check_branch
          %632 = sbr.rel (%p630) target = $region72
        $region71: #{encoder_decoder_forward.1} parent=11 // pred_region
          _
        $region72: #{encoder_decoder_forward.1} parent=11 // pred_fallthru
          _
        // Predicated region
        $region73: #{encoder_decoder_forward.1} parent=11 // pred_check
          %p633 = pneg %p421
        $region74: #{encoder_decoder_forward.1} parent=11 // pred_check_branch
          %635 = sbr.rel (%p633) target = $region76
        $region75: #{encoder_decoder_forward.1} parent=11 // pred_region
          _
        $region76: #{encoder_decoder_forward.1} parent=11 // pred_fallthru
          _
        // Predicated region
        $region77: #{encoder_decoder_forward.1} parent=11 // pred_check
          %p636 = pneg %p442
        $region78: #{encoder_decoder_forward.1} parent=11 // pred_check_branch
          %638 = sbr.rel (%p636) target = $region80
        $region79: #{encoder_decoder_forward.1} parent=11 // pred_region
          _
        $region80: #{encoder_decoder_forward.1} parent=11 // pred_fallthru
          _
        // Predicated region
        $region81: #{encoder_decoder_forward.1} parent=11 // pred_check
          %p639 = pneg %p463
        $region82: #{encoder_decoder_forward.1} parent=11 // pred_check_branch
          %641 = sbr.rel (%p639) target = $region84
        $region83: #{encoder_decoder_forward.1} parent=11 // pred_region
          _
        $region84: #{encoder_decoder_forward.1} parent=11 // pred_fallthru
          _
        // Predicated region
        $region85: #{encoder_decoder_forward.1} parent=11 // pred_check
          %p642 = pneg %p484
        $region86: #{encoder_decoder_forward.1} parent=11 // pred_check_branch
          %644 = sbr.rel (%p642) target = $region88
        $region87: #{encoder_decoder_forward.1} parent=11 // pred_region
          _
        $region88: #{encoder_decoder_forward.1} parent=11 // pred_fallthru
          _
        // Predicated region
        $region89: #{encoder_decoder_forward.1} parent=11 // pred_check
          %p645 = pneg %p505
        $region90: #{encoder_decoder_forward.1} parent=11 // pred_check_branch
          %647 = sbr.rel (%p645) target = $region92
        $region91: #{encoder_decoder_forward.1} parent=11 // pred_region
          _
        $region92: #{encoder_decoder_forward.1} parent=11 // pred_fallthru
          _
        // Predicated region
        $region93: #{encoder_decoder_forward.1} parent=11 // pred_check
          %p648 = pneg %p526
        $region94: #{encoder_decoder_forward.1} parent=11 // pred_check_branch
          %650 = sbr.rel (%p648) target = $region96
        $region95: #{encoder_decoder_forward.1} parent=11 // pred_region
          _
        $region96: #{encoder_decoder_forward.1} parent=11 // pred_fallthru
          _
        // Predicated region
        $region97: #{encoder_decoder_forward.1} parent=11 // pred_check
          %p651 = pneg %p547
        $region98: #{encoder_decoder_forward.1} parent=11 // pred_check_branch
          %653 = sbr.rel (%p651) target = $region100
        $region99: #{encoder_decoder_forward.1} parent=11 // pred_region
          _
        $region100: #{encoder_decoder_forward.1} parent=11 // pred_fallthru
          _
      $region12: #{encoder_decoder_forward.1} parent=5 // pred_fallthru
        _
      %p654 = scmp.lt.s32.totalorder %s33, 2
      // Predicated region
      $region101: #{encoder_decoder_forward.1} parent=5 // pred_check
        %p655 = pneg %p654
      $region102: #{encoder_decoder_forward.1} parent=5 // pred_check_branch
        %657 = sbr.rel (%p655) target = $region104
      $region103: #{encoder_decoder_forward.1} parent=5 // pred_region
        // Predicated region
        $region105: #{encoder_decoder_forward.1} parent=103 // pred_check
          %p658 = pneg %p53
        $region106: #{encoder_decoder_forward.1} parent=103 // pred_check_branch
          %660 = sbr.rel (%p658) target = $region108
        $region107: #{encoder_decoder_forward.1} parent=103 // pred_region
          %p661 = scmp.lt.s32.totalorder %s33, 1
          %s662 = scalar_select %p661, %s33, 1
          %s663 = smul.addr %s662, 2
          %s664 = smul.addr %s663, 8
          %s665 = scalar_lea.vmem %s0, %s664
        $region108: #{encoder_decoder_forward.1} parent=103 // pred_fallthru
          _
        // Predicated region
        $region109: #{encoder_decoder_forward.1} parent=103 // pred_check
          %p666 = pneg %p79
        $region110: #{encoder_decoder_forward.1} parent=103 // pred_check_branch
          %668 = sbr.rel (%p666) target = $region112
        $region111: #{encoder_decoder_forward.1} parent=103 // pred_region
          %p669 = scmp.lt.s32.totalorder %s33, 1
          %s670 = scalar_select %p669, %s33, 1
          %s671 = smul.addr %s670, 8
          %s672 = scalar_lea.vmem %s1, %s671
        $region112: #{encoder_decoder_forward.1} parent=103 // pred_fallthru
          _
      $region104: #{encoder_decoder_forward.1} parent=5 // pred_fallthru
        _
      %p673 = scmp.le.s32.totalorder 1, %s33
      %p674 = scmp.lt.s32.totalorder %s33, 3
      %p675 = pnand %p673, %p674
      %p676 = pneg %p675
      // Predicated region
      $region113: #{encoder_decoder_forward.1} parent=5 // pred_check
        _
      $region114: #{encoder_decoder_forward.1} parent=5 // pred_check_branch
        %678 = sbr.rel (%p675) target = $region116
      $region115: #{encoder_decoder_forward.1} parent=5 // pred_region
        %s679 = ssub.s32 %s33, 1
        %p680 = scmp.lt.s32.totalorder %s38, 1
        %s681 = scalar_select %p680, %s38, 1
        %s682 = smul.addr %s681, 2
        %s683 = smul.addr %s682, 8
        %s684 = scalar_lea.vmem %s0, %s683
        %p685 = pneg %p59
        %p686 = pneg %p56
        %p687 = scmp.lt.s32.totalorder %s38, 1
        %s688 = scalar_select %p687, %s38, 1
        %s689 = smul.addr %s688, 8
        %s690 = scalar_lea.vmem %s1, %s689
        %p691 = pneg %p85
        %p692 = pneg %p82
        %p693 = pneg %p106
        %p694 = pneg %p103
        %p695 = pneg %p127
        %p696 = pneg %p124
        %p697 = pneg %p148
        %p698 = pneg %p145
        %p699 = pneg %p169
        %p700 = pneg %p166
        %p701 = pneg %p190
        %p702 = pneg %p187
        %p703 = pneg %p211
        %p704 = pneg %p208
        %p705 = pneg %p232
        %p706 = pneg %p229
        %p707 = pneg %p253
        %p708 = pneg %p250
        %p709 = pneg %p274
        %p710 = pneg %p271
        %p711 = pneg %p295
        %p712 = pneg %p292
        %p713 = pneg %p316
        %p714 = pneg %p313
        %p715 = pneg %p337
        %p716 = pneg %p334
        %p717 = pneg %p358
        %p718 = pneg %p355
        %p719 = pneg %p379
        %p720 = pneg %p376
        %p721 = pneg %p400
        %p722 = pneg %p397
        %p723 = pneg %p421
        %p724 = pneg %p418
        %p725 = pneg %p442
        %p726 = pneg %p439
        %p727 = pneg %p463
        %p728 = pneg %p460
        %p729 = pneg %p484
        %p730 = pneg %p481
        %p731 = pneg %p505
        %p732 = pneg %p502
        %p733 = pneg %p526
        %p734 = pneg %p523
        %p735 = pneg %p547
        %p736 = pneg %p544
        %p737 = pneg %p573
        %p738 = pneg %p570
        %s739 = sand.u32 %s560, 1
        %s740 = scalar_lea.sflag [#allocation3], %s739
        %s741 = sand.u32 %s560, 1
        %s742 = smul.addr %s741, 8
        %s743 = scalar_lea.vmem [#allocation2], %s742
        %p744 = scmp.lt.s32.totalorder %s38, 1
        %s745 = scalar_select %p744, %s38, 1
        %s746 = smul.addr %s745, 2
        %s747 = smul.addr %s746, 8
        %s748 = scalar_lea.vmem %s0, %s747
        %p749 = scmp.lt.s32.totalorder %s38, 1
        %s750 = scalar_select %p749, %s38, 1
        %s751 = smul.addr %s750, 8
        %s752 = scalar_lea.vmem %s1, %s751
        %v754 = vld [vmem:[%s748] sm:$0xff]
        %v755 = vld [vmem:[%s748 + $0x8] sm:$0xff]
        %v756 = vpack.c.bf16 %v755, %v754
        %v757 = vld [vmem:[%s2] sm:$0xf]
        %v758 = vld [vmem:[%s2 + $0x4] sm:$0xf]
        %v759 = vld [vmem:[%s2 + $0x8] sm:$0xf]
        %v760 = vld [vmem:[%s2 + $0xc] sm:$0xf]
        %v761 = vld [vmem:[%s2 + $0x10] sm:$0xf]
        %v762 = vld [vmem:[%s2 + $0x14] sm:$0xf]
        %v763 = vld [vmem:[%s2 + $0x18] sm:$0xf]
        %v764 = vld [vmem:[%s2 + $0x1c] sm:$0xf]
        %v765 = vld [vmem:[%s3] sm:$0x1]
        %v767 = vlaneseq
        %v768 = vshrl.u32 %v767, 7
        %v769 = vsub.s32 0, %v768
        %v770 = vrot.slane %v765, %v769
        %v780 = vunpack.c.l.b16 %v757
        %v781 = vunpack.c.l.b16 %v758
        %v782 = vunpack.c.l.b16 %v759
        %v783 = vunpack.c.l.b16 %v760
        %v784 = vunpack.c.l.b16 %v761
        %v785 = vunpack.c.l.b16 %v762
        %v786 = vunpack.c.l.b16 %v763
        %v787 = vunpack.c.l.b16 %v764
        %v788 = vpack.c.b16 %v781, %v780
        %v789 = vpack.c.b16 %v783, %v782
        %v790 = vpack.c.b16 %v785, %v784
        %v791 = vpack.c.b16 %v787, %v786
        %vm796 = vcmask 523264
        %v798 = vsel %vm796, %v756, 0
        %800 = vmatprep.subr.bf16.mxu0 0
        %801 = vmatpush1.bf16.msra.mxu0 %v788
        %802 = vmatprep.subr.bf16.mxu0 0
        %803 = vmatpush1.bf16.msra.mxu0 %v789
        %804 = vmatprep.subr.bf16.mxu0 0
        %805 = vmatpush1.bf16.msra.mxu0 %v790
        %806 = vmatprep.subr.bf16.mxu0 0
        %807 = vmatpush1.bf16.msra.mxu0 %v791
        %808 = vmatprep.subr.bf16.mxu0 0
        %809 = vmatpush1.bf16.msra.mxu0 0
        %810 = vmatprep.subr.bf16.mxu0 0
        %811 = vmatpush1.bf16.msra.mxu0 0
        %812 = vmatprep.subr.bf16.mxu0 0
        %813 = vmatpush1.bf16.msra.mxu0 0
        %814 = vmatprep.subr.bf16.mxu0 0
        %815 = vmatpush1.bf16.msra.mxu0 0
        %816 = vmatprep.subr.bf16.mxu0 0
        %817 = vmatpush1.bf16.msra.mxu0 0
        %818 = vmatprep.subr.bf16.mxu0 0
        %819 = vmatpush1.bf16.msra.mxu0 0
        %820 = vmatprep.subr.bf16.mxu0 0
        %821 = vmatpush1.bf16.msra.mxu0 0
        %822 = vmatprep.subr.bf16.mxu0 0
        %823 = vmatpush1.bf16.msra.mxu0 0
        %824 = vmatprep.subr.bf16.mxu0 0
        %825 = vmatpush1.bf16.msra.mxu0 0
        %826 = vmatprep.subr.bf16.mxu0 0
        %827 = vmatpush1.bf16.msra.mxu0 0
        %828 = vmatprep.subr.bf16.mxu0 0
        %829 = vmatpush1.bf16.msra.mxu0 0
        %830 = vmatprep.subr.bf16.mxu0 0
        %831 = vmatpush1.bf16.msra.mxu0 0
        %832 = vmatprep.mubr.bf16.mxu0 0
        %833 = vmatmul.mubr.bf16.gmra.mrb[0].mxu0 %v798
        %v834 = vpop.f32.mrb[0].mxu0
        %v835 = vadd.f32 %v770, %v834
        %v836 = vpop.f32.mrb[0].mxu0
        %v837 = vpop.f32.mrb[0].mxu0
        %v838 = vadd.f32 %v770, %v837
        %v839 = vpop.f32.mrb[0].mxu0
        %840 = vdwg.mxu0
        %v841 = vld [vmem:[%s4] sm:$0xff]
        %v842 = vld [vmem:[%s4 + $0x8] sm:$0xff]
        %v843 = vadd.f32 %v835, %v841
        %v844 = vadd.f32 %v838, %v842
        %v845 = vld [vmem:[%s752] sm:$0xff]
        %v846 = vlaneseq
        %v847 = vand.u32 %v846, 127
        %848 = vset.pattern.permute.xlu0 0
        %849 = vperm.xlu0 %848, %v845
        %v850 = vpop.permute.xlu0 %849
        %vm851 = vcmp.eq.s32.totalorder %v850, %v847
        %v852 = vsel %vm851, 1, 0
        %v853 = vcvt.s32.f32 %v852
        %v854 = vpack.c.bf16 %v853, %v853
        %v855 = vld [vmem:[%s5] sm:$0xf]
        %v856 = vld [vmem:[%s5 + $0x4] sm:$0xf]
        %v857 = vld [vmem:[%s5 + $0x8] sm:$0xf]
        %v858 = vld [vmem:[%s5 + $0xc] sm:$0xf]
        %v859 = vld [vmem:[%s5 + $0x10] sm:$0xf]
        %v860 = vld [vmem:[%s5 + $0x14] sm:$0xf]
        %v861 = vld [vmem:[%s5 + $0x18] sm:$0xf]
        %v862 = vld [vmem:[%s5 + $0x1c] sm:$0xf]
        %v863 = vld [vmem:[%s5 + $0x20] sm:$0xf]
        %v864 = vld [vmem:[%s5 + $0x24] sm:$0xf]
        %v865 = vld [vmem:[%s5 + $0x28] sm:$0xf]
        %v866 = vld [vmem:[%s5 + $0x2c] sm:$0xf]
        %v867 = vld [vmem:[%s5 + $0x30] sm:$0xf]
        %v868 = vld [vmem:[%s5 + $0x34] sm:$0xf]
        %v869 = vld [vmem:[%s5 + $0x38] sm:$0xf]
        %v870 = vld [vmem:[%s5 + $0x3c] sm:$0xf]
        %v871 = vld [vmem:[%s6] sm:$0xff]
        %v888 = vunpack.c.l.b16 %v855
        %v889 = vunpack.c.l.b16 %v856
        %v890 = vunpack.c.l.b16 %v857
        %v891 = vunpack.c.l.b16 %v858
        %v892 = vunpack.c.l.b16 %v859
        %v893 = vunpack.c.l.b16 %v860
        %v894 = vunpack.c.l.b16 %v861
        %v895 = vunpack.c.l.b16 %v862
        %v896 = vunpack.c.l.b16 %v863
        %v897 = vunpack.c.l.b16 %v864
        %v898 = vunpack.c.l.b16 %v865
        %v899 = vunpack.c.l.b16 %v866
        %v900 = vunpack.c.l.b16 %v867
        %v901 = vunpack.c.l.b16 %v868
        %v902 = vunpack.c.l.b16 %v869
        %v903 = vunpack.c.l.b16 %v870
        %v904 = vpack.c.b16 %v889, %v888
        %v905 = vpack.c.b16 %v891, %v890
        %v906 = vpack.c.b16 %v893, %v892
        %v907 = vpack.c.b16 %v895, %v894
        %v908 = vpack.c.b16 %v897, %v896
        %v909 = vpack.c.b16 %v899, %v898
        %v910 = vpack.c.b16 %v901, %v900
        %v911 = vpack.c.b16 %v903, %v902
        %920 = vmatprep.subr.bf16.mxu0 0
        %921 = vmatpush1.bf16.msra.mxu0 %v904
        %922 = vmatprep.subr.bf16.mxu0 0
        %923 = vmatpush1.bf16.msra.mxu0 %v905
        %924 = vmatprep.subr.bf16.mxu0 0
        %925 = vmatpush1.bf16.msra.mxu0 %v906
        %926 = vmatprep.subr.bf16.mxu0 0
        %927 = vmatpush1.bf16.msra.mxu0 %v907
        %928 = vmatprep.subr.bf16.mxu0 0
        %929 = vmatpush1.bf16.msra.mxu0 %v908
        %930 = vmatprep.subr.bf16.mxu0 0
        %931 = vmatpush1.bf16.msra.mxu0 %v909
        %932 = vmatprep.subr.bf16.mxu0 0
        %933 = vmatpush1.bf16.msra.mxu0 %v910
        %934 = vmatprep.subr.bf16.mxu0 0
        %935 = vmatpush1.bf16.msra.mxu0 %v911
        %936 = vmatprep.subr.bf16.mxu0 0
        %937 = vmatpush1.bf16.msra.mxu0 0
        %938 = vmatprep.subr.bf16.mxu0 0
        %939 = vmatpush1.bf16.msra.mxu0 0
        %940 = vmatprep.subr.bf16.mxu0 0
        %941 = vmatpush1.bf16.msra.mxu0 0
        %942 = vmatprep.subr.bf16.mxu0 0
        %943 = vmatpush1.bf16.msra.mxu0 0
        %944 = vmatprep.subr.bf16.mxu0 0
        %945 = vmatpush1.bf16.msra.mxu0 0
        %946 = vmatprep.subr.bf16.mxu0 0
        %947 = vmatpush1.bf16.msra.mxu0 0
        %948 = vmatprep.subr.bf16.mxu0 0
        %949 = vmatpush1.bf16.msra.mxu0 0
        %950 = vmatprep.subr.bf16.mxu0 0
        %951 = vmatpush1.bf16.msra.mxu0 0
        %952 = vmatprep.mubr.bf16.mxu0 0
        %953 = vmatmul.mubr.bf16.gmra.mrb[0].mxu0 %v854
        %v954 = vpop.f32.mrb[0].mxu0
        %v955 = vadd.f32 %v871, %v954
        %v956 = vpop.f32.mrb[0].mxu0
        %v957 = vpop.f32.mrb[0].mxu0
        %v958 = vpop.f32.mrb[0].mxu0
        %959 = vdwg.mxu0
        %vm960 = vcmask 261120
        %v961 = vsel %vm960, %v955, 0.0
        %962 = vadd.xlane.f32.xlu0 %v961
        %v963 = vpop.xlane.xlu0 %962
        %v964 = vrcp.pop 32.0
        %v965 = vmul.f32 %v963, %v964
        %v966 = vsub.f32 %v955, %v965
        %v967 = vmul.f32 %v966, %v966
        %v968 = vsel %vm960, %v967, 0.0
        %969 = vadd.xlane.f32.xlu0 %v968
        %v970 = vpop.xlane.xlu0 %969
        %v971 = vmul.f32 %v970, %v964
        %v972 = vadd.f32 %v971, 1e-05
        %v973 = vrsqrt.pop %v972
        %v974 = vmul.f32 %v966, %v973
        %v975 = vld [vmem:[%s16] sm:$0x1]
        %v977 = vlaneseq
        %v978 = vshrl.u32 %v977, 7
        %v979 = vsub.s32 0, %v978
        %v980 = vrot.slane %v975, %v979
        %v982 = vmul.f32 %v974, %v980
        %v983 = vld [vmem:[%s17] sm:$0x1]
        %v985 = vlaneseq
        %v986 = vshrl.u32 %v985, 7
        %v987 = vsub.s32 0, %v986
        %v988 = vrot.slane %v983, %v987
        %v990 = vadd.f32 %v982, %v988
        %v991 = vpack.c.bf16 %v990, %v990
        %v992 = vld [vmem:[%s7] sm:$0xf]
        %v993 = vld [vmem:[%s7 + $0x4] sm:$0xf]
        %v994 = vld [vmem:[%s7 + $0x8] sm:$0xf]
        %v995 = vld [vmem:[%s7 + $0xc] sm:$0xf]
        %v1000 = vunpack.c.l.b16 %v992
        %v1001 = vunpack.c.l.b16 %v993
        %v1002 = vunpack.c.l.b16 %v994
        %v1003 = vunpack.c.l.b16 %v995
        %v1004 = vpack.c.b16 %v1001, %v1000
        %v1005 = vpack.c.b16 %v1003, %v1002
        %v1009 = vsel %vm960, %v991, 0
        %1011 = vmatprep.subr.bf16.mxu0 0
        %1012 = vmatpush1.bf16.msra.mxu0 %v1004
        %1013 = vmatprep.subr.bf16.mxu0 0
        %1014 = vmatpush1.bf16.msra.mxu0 %v1005
        %1015 = vmatprep.subr.bf16.mxu0 0
        %1016 = vmatpush1.bf16.msra.mxu0 0
        %1017 = vmatprep.subr.bf16.mxu0 0
        %1018 = vmatpush1.bf16.msra.mxu0 0
        %1019 = vmatprep.subr.bf16.mxu0 0
        %1020 = vmatpush1.bf16.msra.mxu0 0
        %1021 = vmatprep.subr.bf16.mxu0 0
        %1022 = vmatpush1.bf16.msra.mxu0 0
        %1023 = vmatprep.subr.bf16.mxu0 0
        %1024 = vmatpush1.bf16.msra.mxu0 0
        %1025 = vmatprep.subr.bf16.mxu0 0
        %1026 = vmatpush1.bf16.msra.mxu0 0
        %1027 = vmatprep.subr.bf16.mxu0 0
        %1028 = vmatpush1.bf16.msra.mxu0 0
        %1029 = vmatprep.subr.bf16.mxu0 0
        %1030 = vmatpush1.bf16.msra.mxu0 0
        %1031 = vmatprep.subr.bf16.mxu0 0
        %1032 = vmatpush1.bf16.msra.mxu0 0
        %1033 = vmatprep.subr.bf16.mxu0 0
        %1034 = vmatpush1.bf16.msra.mxu0 0
        %1035 = vmatprep.subr.bf16.mxu0 0
        %1036 = vmatpush1.bf16.msra.mxu0 0
        %1037 = vmatprep.subr.bf16.mxu0 0
        %1038 = vmatpush1.bf16.msra.mxu0 0
        %1039 = vmatprep.subr.bf16.mxu0 0
        %1040 = vmatpush1.bf16.msra.mxu0 0
        %1041 = vmatprep.subr.bf16.mxu0 0
        %1042 = vmatpush1.bf16.msra.mxu0 0
        %1043 = vmatprep.mubr.bf16.mxu0 0
        %1044 = vmatmul.mubr.bf16.gmra.mrb[0].mxu0 %v1009
        %v1045 = vpop.f32.mrb[0].mxu0
        %v1046 = vadd.f32 0.0, %v1045
        %v1047 = vpop.f32.mrb[0].mxu0
        %v1048 = vpop.f32.mrb[0].mxu0
        %v1049 = vpop.f32.mrb[0].mxu0
        %1050 = vdwg.mxu0
        %1052 = vrot.lane.b32.xlu0 %v1046, 96
        %v1053 = vpop.permute.xlu0 %1052
        %v1054 = vsel %vm960, %v1046, 0
        %v1056 = vsel %vm960, %v1053, 0
        %1058 = vmatprep.subr.mxu0 0.0
        %1059 = vmatpush1.xpose.msra.mxu0 %v1056
        %1060 = vmatprep.subr.mxu0 0.0
        %1061 = vmatpush1.xpose.msra.mxu0 0.0
        %1062 = vmatprep.subr.mxu0 0.0
        %1063 = vmatpush1.xpose.msra.mxu0 0.0
        %1064 = vmatprep.subr.mxu0 0.0
        %1065 = vmatpush1.xpose.msra.mxu0 0.0
        %1066 = vmatprep.subr.mxu0 0.0
        %1067 = vmatpush1.xpose.msra.mxu0 0.0
        %1068 = vmatprep.subr.mxu0 0.0
        %1069 = vmatpush1.xpose.msra.mxu0 0.0
        %1070 = vmatprep.subr.mxu0 0.0
        %1071 = vmatpush1.xpose.msra.mxu0 0.0
        %1072 = vmatprep.subr.mxu0 0.0
        %1073 = vmatpush1.xpose.msra.mxu0 0.0
        %1074 = vmatprep.subr.mxu0 0.0
        %1075 = vmatpush1.xpose.msra.mxu0 0.0
        %1076 = vmatprep.subr.mxu0 0.0
        %1077 = vmatpush1.xpose.msra.mxu0 0.0
        %1078 = vmatprep.subr.mxu0 0.0
        %1079 = vmatpush1.xpose.msra.mxu0 0.0
        %1080 = vmatprep.subr.mxu0 0.0
        %1081 = vmatpush1.xpose.msra.mxu0 0.0
        %1082 = vmatprep.subr.mxu0 0.0
        %1083 = vmatpush1.xpose.msra.mxu0 0.0
        %1084 = vmatprep.subr.mxu0 0.0
        %1085 = vmatpush1.xpose.msra.mxu0 0.0
        %1086 = vmatprep.subr.mxu0 0.0
        %1087 = vmatpush1.xpose.msra.mxu0 0.0
        %1088 = vmatprep.subr.mxu0 0.0
        %1089 = vmatpush1.xpose.msra.mxu0 0.0
        %1090 = vmatprep.subr.mxu0 0.0
        %1091 = vmatpush1.xpose.msra.mxu0 0.0
        %1092 = vmatprep.subr.mxu0 0.0
        %1093 = vmatpush1.xpose.msra.mxu0 0.0
        %1094 = vmatprep.subr.mxu0 0.0
        %1095 = vmatpush1.xpose.msra.mxu0 0.0
        %1096 = vmatprep.subr.mxu0 0.0
        %1097 = vmatpush1.xpose.msra.mxu0 0.0
        %1098 = vmatprep.subr.mxu0 0.0
        %1099 = vmatpush1.xpose.msra.mxu0 0.0
        %1100 = vmatprep.subr.mxu0 0.0
        %1101 = vmatpush1.xpose.msra.mxu0 0.0
        %1102 = vmatprep.subr.mxu0 0.0
        %1103 = vmatpush1.xpose.msra.mxu0 0.0
        %1104 = vmatprep.subr.mxu0 0.0
        %1105 = vmatpush1.xpose.msra.mxu0 0.0
        %1106 = vmatprep.subr.mxu0 0.0
        %1107 = vmatpush1.xpose.msra.mxu0 0.0
        %1108 = vmatprep.subr.mxu0 0.0
        %1109 = vmatpush1.xpose.msra.mxu0 0.0
        %1110 = vmatprep.subr.mxu0 0.0
        %1111 = vmatpush1.xpose.msra.mxu0 0.0
        %1112 = vmatprep.subr.mxu0 0.0
        %1113 = vmatpush1.xpose.msra.mxu0 0.0
        %1114 = vmatprep.subr.mxu0 0.0
        %1115 = vmatpush1.xpose.msra.mxu0 0.0
        %1116 = vmatprep.subr.mxu0 0.0
        %1117 = vmatpush1.xpose.msra.mxu0 0.0
        %1118 = vmatprep.subr.mxu0 0.0
        %1119 = vmatpush1.xpose.msra.mxu0 0.0
        %1120 = vmatprep.subr.mxu0 0.0
        %1121 = vmatpush1.xpose.msra.mxu0 0.0
        %1122 = vmatprep.mubr.f32.mxu0 0.0
        %1123 = vmatmul.mubr.f32.gmra.mrb[0].mxu0 %v1054
        %v1124 = vpop.f32.mrb[0].mxu0
        %v1125 = vadd.f32 0.0, %v1124
        %v1126 = vpop.f32.mrb[0].mxu0
        %1127 = vdwg.mxu0
        %v1128 = vlaneseq
        %v1129 = vshrl.u32 %v1128, 7
        %vm1130 = vcmp.le.s32.totalorder %v847, %v1129
        %v1131 = vsel %vm1130, %v1125, -1e+30
        %vm1132 = vcmask 64512
        %v1133 = vsel %vm1132, %v1131, -inf
        %1134 = vmax.xlane.f32.xlu0 %v1133
        %v1135 = vpop.xlane.xlu0 %1134
        %v1136 = vsub.f32 %v1131, %v1135
        %v1137 = vmul.f32 %v1136, 1.442695
        %v1138 = vpow.pop %v1137
        %v1139 = vsel %vm1132, %v1138, 0.0
        %1140 = vadd.xlane.f32.xlu0 %v1139
        %v1141 = vpop.xlane.xlu0 %1140
        %v1142 = vrcp.pop %v1141
        %v1143 = vmul.f32 %v1138, %v1142
        %1144 = vrot.lane.b32.xlu0 %v1046, 64
        %v1145 = vpop.permute.xlu0 %1144
        %v1148 = vsel %vm1132, %v1143, 0
        %1150 = vmatprep.subr.mxu0 0.0
        %1151 = vmatpush1.msra.mxu0 %v1145
        %1152 = vmatprep.subr.mxu0 0.0
        %1153 = vmatpush1.msra.mxu0 0.0
        %1154 = vmatprep.subr.mxu0 0.0
        %1155 = vmatpush1.msra.mxu0 0.0
        %1156 = vmatprep.subr.mxu0 0.0
        %1157 = vmatpush1.msra.mxu0 0.0
        %1158 = vmatprep.subr.mxu0 0.0
        %1159 = vmatpush1.msra.mxu0 0.0
        %1160 = vmatprep.subr.mxu0 0.0
        %1161 = vmatpush1.msra.mxu0 0.0
        %1162 = vmatprep.subr.mxu0 0.0
        %1163 = vmatpush1.msra.mxu0 0.0
        %1164 = vmatprep.subr.mxu0 0.0
        %1165 = vmatpush1.msra.mxu0 0.0
        %1166 = vmatprep.subr.mxu0 0.0
        %1167 = vmatpush1.msra.mxu0 0.0
        %1168 = vmatprep.subr.mxu0 0.0
        %1169 = vmatpush1.msra.mxu0 0.0
        %1170 = vmatprep.subr.mxu0 0.0
        %1171 = vmatpush1.msra.mxu0 0.0
        %1172 = vmatprep.subr.mxu0 0.0
        %1173 = vmatpush1.msra.mxu0 0.0
        %1174 = vmatprep.subr.mxu0 0.0
        %1175 = vmatpush1.msra.mxu0 0.0
        %1176 = vmatprep.subr.mxu0 0.0
        %1177 = vmatpush1.msra.mxu0 0.0
        %1178 = vmatprep.subr.mxu0 0.0
        %1179 = vmatpush1.msra.mxu0 0.0
        %1180 = vmatprep.subr.mxu0 0.0
        %1181 = vmatpush1.msra.mxu0 0.0
        %1182 = vmatprep.subr.mxu0 0.0
        %1183 = vmatpush1.msra.mxu0 0.0
        %1184 = vmatprep.subr.mxu0 0.0
        %1185 = vmatpush1.msra.mxu0 0.0
        %1186 = vmatprep.subr.mxu0 0.0
        %1187 = vmatpush1.msra.mxu0 0.0
        %1188 = vmatprep.subr.mxu0 0.0
        %1189 = vmatpush1.msra.mxu0 0.0
        %1190 = vmatprep.subr.mxu0 0.0
        %1191 = vmatpush1.msra.mxu0 0.0
        %1192 = vmatprep.subr.mxu0 0.0
        %1193 = vmatpush1.msra.mxu0 0.0
        %1194 = vmatprep.subr.mxu0 0.0
        %1195 = vmatpush1.msra.mxu0 0.0
        %1196 = vmatprep.subr.mxu0 0.0
        %1197 = vmatpush1.msra.mxu0 0.0
        %1198 = vmatprep.subr.mxu0 0.0
        %1199 = vmatpush1.msra.mxu0 0.0
        %1200 = vmatprep.subr.mxu0 0.0
        %1201 = vmatpush1.msra.mxu0 0.0
        %1202 = vmatprep.subr.mxu0 0.0
        %1203 = vmatpush1.msra.mxu0 0.0
        %1204 = vmatprep.subr.mxu0 0.0
        %1205 = vmatpush1.msra.mxu0 0.0
        %1206 = vmatprep.subr.mxu0 0.0
        %1207 = vmatpush1.msra.mxu0 0.0
        %1208 = vmatprep.subr.mxu0 0.0
        %1209 = vmatpush1.msra.mxu0 0.0
        %1210 = vmatprep.subr.mxu0 0.0
        %1211 = vmatpush1.msra.mxu0 0.0
        %1212 = vmatprep.subr.mxu0 0.0
        %1213 = vmatpush1.msra.mxu0 0.0
        %1214 = vmatprep.mubr.f32.mxu0 0.0
        %1215 = vmatmul.mubr.f32.gmra.mrb[0].mxu0 %v1148
        %v1216 = vpop.f32.mrb[0].mxu0
        %v1217 = vadd.f32 0.0, %v1216
        %v1218 = vpop.f32.mrb[0].mxu0
        %1219 = vdwg.mxu0
        %v1220 = vpack.c.bf16 %v1217, %v1217
        %v1221 = vld [vmem:[%s8] sm:$0xf]
        %v1222 = vld [vmem:[%s8 + $0x4] sm:$0xf]
        %v1223 = vld [vmem:[%s8 + $0x8] sm:$0xf]
        %v1224 = vld [vmem:[%s8 + $0xc] sm:$0xf]
        %v1229 = vunpack.c.l.b16 %v1221
        %v1230 = vunpack.c.l.b16 %v1222
        %v1231 = vunpack.c.l.b16 %v1223
        %v1232 = vunpack.c.l.b16 %v1224
        %v1233 = vpack.c.b16 %v1230, %v1229
        %v1234 = vpack.c.b16 %v1232, %v1231
        %v1238 = vsel %vm960, %v1220, 0
        %1240 = vmatprep.subr.bf16.mxu0 0
        %1241 = vmatpush1.bf16.msra.mxu0 %v1233
        %1242 = vmatprep.subr.bf16.mxu0 0
        %1243 = vmatpush1.bf16.msra.mxu0 %v1234
        %1244 = vmatprep.subr.bf16.mxu0 0
        %1245 = vmatpush1.bf16.msra.mxu0 0
        %1246 = vmatprep.subr.bf16.mxu0 0
        %1247 = vmatpush1.bf16.msra.mxu0 0
        %1248 = vmatprep.subr.bf16.mxu0 0
        %1249 = vmatpush1.bf16.msra.mxu0 0
        %1250 = vmatprep.subr.bf16.mxu0 0
        %1251 = vmatpush1.bf16.msra.mxu0 0
        %1252 = vmatprep.subr.bf16.mxu0 0
        %1253 = vmatpush1.bf16.msra.mxu0 0
        %1254 = vmatprep.subr.bf16.mxu0 0
        %1255 = vmatpush1.bf16.msra.mxu0 0
        %1256 = vmatprep.subr.bf16.mxu0 0
        %1257 = vmatpush1.bf16.msra.mxu0 0
        %1258 = vmatprep.subr.bf16.mxu0 0
        %1259 = vmatpush1.bf16.msra.mxu0 0
        %1260 = vmatprep.subr.bf16.mxu0 0
        %1261 = vmatpush1.bf16.msra.mxu0 0
        %1262 = vmatprep.subr.bf16.mxu0 0
        %1263 = vmatpush1.bf16.msra.mxu0 0
        %1264 = vmatprep.subr.bf16.mxu0 0
        %1265 = vmatpush1.bf16.msra.mxu0 0
        %1266 = vmatprep.subr.bf16.mxu0 0
        %1267 = vmatpush1.bf16.msra.mxu0 0
        %1268 = vmatprep.subr.bf16.mxu0 0
        %1269 = vmatpush1.bf16.msra.mxu0 0
        %1270 = vmatprep.subr.bf16.mxu0 0
        %1271 = vmatpush1.bf16.msra.mxu0 0
        %1272 = vmatprep.mubr.bf16.mxu0 0
        %1273 = vmatmul.mubr.bf16.gmra.mrb[0].mxu0 %v1238
        %v1274 = vpop.f32.mrb[0].mxu0
        %v1275 = vadd.f32 0.0, %v1274
        %v1276 = vpop.f32.mrb[0].mxu0
        %v1277 = vpop.f32.mrb[0].mxu0
        %v1278 = vpop.f32.mrb[0].mxu0
        %1279 = vdwg.mxu0
        %v1280 = vadd.f32 %v955, %v1275
        %v1281 = vsel %vm960, %v1280, 0.0
        %1282 = vadd.xlane.f32.xlu0 %v1281
        %v1283 = vpop.xlane.xlu0 %1282
        %v1284 = vmul.f32 %v1283, %v964
        %v1285 = vsub.f32 %v1280, %v1284
        %v1286 = vmul.f32 %v1285, %v1285
        %v1287 = vsel %vm960, %v1286, 0.0
        %1288 = vadd.xlane.f32.xlu0 %v1287
        %v1289 = vpop.xlane.xlu0 %1288
        %v1290 = vmul.f32 %v1289, %v964
        %v1291 = vadd.f32 %v1290, 1e-05
        %v1292 = vrsqrt.pop %v1291
        %v1293 = vmul.f32 %v1285, %v1292
        %v1294 = vld [vmem:[%s18] sm:$0x1]
        %v1296 = vlaneseq
        %v1297 = vshrl.u32 %v1296, 7
        %v1298 = vsub.s32 0, %v1297
        %v1299 = vrot.slane %v1294, %v1298
        %v1301 = vmul.f32 %v1293, %v1299
        %v1302 = vld [vmem:[%s19] sm:$0x1]
        %v1304 = vlaneseq
        %v1305 = vshrl.u32 %v1304, 7
        %v1306 = vsub.s32 0, %v1305
        %v1307 = vrot.slane %v1302, %v1306
        %v1309 = vadd.f32 %v1301, %v1307
        %v1310 = vpack.c.bf16 %v1309, %v1309
        %v1311 = vld [vmem:[%s9] sm:$0xf]
        %v1312 = vld [vmem:[%s9 + $0x4] sm:$0xf]
        %v1313 = vld [vmem:[%s9 + $0x8] sm:$0xf]
        %v1314 = vld [vmem:[%s9 + $0xc] sm:$0xf]
        %v1319 = vunpack.c.l.b16 %v1311
        %v1320 = vunpack.c.l.b16 %v1312
        %v1321 = vunpack.c.l.b16 %v1313
        %v1322 = vunpack.c.l.b16 %v1314
        %v1323 = vpack.c.b16 %v1320, %v1319
        %v1324 = vpack.c.b16 %v1322, %v1321
        %v1328 = vsel %vm960, %v1310, 0
        %1330 = vmatprep.subr.bf16.mxu0 0
        %1331 = vmatpush1.bf16.msra.mxu0 %v1323
        %1332 = vmatprep.subr.bf16.mxu0 0
        %1333 = vmatpush1.bf16.msra.mxu0 %v1324
        %1334 = vmatprep.subr.bf16.mxu0 0
        %1335 = vmatpush1.bf16.msra.mxu0 0
        %1336 = vmatprep.subr.bf16.mxu0 0
        %1337 = vmatpush1.bf16.msra.mxu0 0
        %1338 = vmatprep.subr.bf16.mxu0 0
        %1339 = vmatpush1.bf16.msra.mxu0 0
        %1340 = vmatprep.subr.bf16.mxu0 0
        %1341 = vmatpush1.bf16.msra.mxu0 0
        %1342 = vmatprep.subr.bf16.mxu0 0
        %1343 = vmatpush1.bf16.msra.mxu0 0
        %1344 = vmatprep.subr.bf16.mxu0 0
        %1345 = vmatpush1.bf16.msra.mxu0 0
        %1346 = vmatprep.subr.bf16.mxu0 0
        %1347 = vmatpush1.bf16.msra.mxu0 0
        %1348 = vmatprep.subr.bf16.mxu0 0
        %1349 = vmatpush1.bf16.msra.mxu0 0
        %1350 = vmatprep.subr.bf16.mxu0 0
        %1351 = vmatpush1.bf16.msra.mxu0 0
        %1352 = vmatprep.subr.bf16.mxu0 0
        %1353 = vmatpush1.bf16.msra.mxu0 0
        %1354 = vmatprep.subr.bf16.mxu0 0
        %1355 = vmatpush1.bf16.msra.mxu0 0
        %1356 = vmatprep.subr.bf16.mxu0 0
        %1357 = vmatpush1.bf16.msra.mxu0 0
        %1358 = vmatprep.subr.bf16.mxu0 0
        %1359 = vmatpush1.bf16.msra.mxu0 0
        %1360 = vmatprep.subr.bf16.mxu0 0
        %1361 = vmatpush1.bf16.msra.mxu0 0
        %1362 = vmatprep.mubr.bf16.mxu0 0
        %1363 = vmatmul.mubr.bf16.gmra.mrb[0].mxu0 %v1328
        %v1364 = vpop.f32.mrb[0].mxu0
        %v1365 = vadd.f32 0.0, %v1364
        %v1366 = vpop.f32.mrb[0].mxu0
        %v1367 = vpop.f32.mrb[0].mxu0
        %v1368 = vpop.f32.mrb[0].mxu0
        %1369 = vdwg.mxu0
        %v1370 = vpack.c.bf16 %v844, %v843
        %v1371 = vld [vmem:[%s10] sm:$0xf]
        %v1372 = vld [vmem:[%s10 + $0x4] sm:$0xf]
        %v1373 = vld [vmem:[%s10 + $0x8] sm:$0xf]
        %v1374 = vld [vmem:[%s10 + $0xc] sm:$0xf]
        %v1379 = vunpack.c.l.b16 %v1371
        %v1380 = vunpack.c.l.b16 %v1372
        %v1381 = vunpack.c.l.b16 %v1373
        %v1382 = vunpack.c.l.b16 %v1374
        %v1383 = vpack.c.b16 %v1380, %v1379
        %v1384 = vpack.c.b16 %v1382, %v1381
        %v1388 = vsel %vm960, %v1370, 0
        %1390 = vmatprep.subr.bf16.mxu0 0
        %1391 = vmatpush1.bf16.msra.mxu0 %v1383
        %1392 = vmatprep.subr.bf16.mxu0 0
        %1393 = vmatpush1.bf16.msra.mxu0 %v1384
        %1394 = vmatprep.subr.bf16.mxu0 0
        %1395 = vmatpush1.bf16.msra.mxu0 0
        %1396 = vmatprep.subr.bf16.mxu0 0
        %1397 = vmatpush1.bf16.msra.mxu0 0
        %1398 = vmatprep.subr.bf16.mxu0 0
        %1399 = vmatpush1.bf16.msra.mxu0 0
        %1400 = vmatprep.subr.bf16.mxu0 0
        %1401 = vmatpush1.bf16.msra.mxu0 0
        %1402 = vmatprep.subr.bf16.mxu0 0
        %1403 = vmatpush1.bf16.msra.mxu0 0
        %1404 = vmatprep.subr.bf16.mxu0 0
        %1405 = vmatpush1.bf16.msra.mxu0 0
        %1406 = vmatprep.subr.bf16.mxu0 0
        %1407 = vmatpush1.bf16.msra.mxu0 0
        %1408 = vmatprep.subr.bf16.mxu0 0
        %1409 = vmatpush1.bf16.msra.mxu0 0
        %1410 = vmatprep.subr.bf16.mxu0 0
        %1411 = vmatpush1.bf16.msra.mxu0 0
        %1412 = vmatprep.subr.bf16.mxu0 0
        %1413 = vmatpush1.bf16.msra.mxu0 0
        %1414 = vmatprep.subr.bf16.mxu0 0
        %1415 = vmatpush1.bf16.msra.mxu0 0
        %1416 = vmatprep.subr.bf16.mxu0 0
        %1417 = vmatpush1.bf16.msra.mxu0 0
        %1418 = vmatprep.subr.bf16.mxu0 0
        %1419 = vmatpush1.bf16.msra.mxu0 0
        %1420 = vmatprep.subr.bf16.mxu0 0
        %1421 = vmatpush1.bf16.msra.mxu0 0
        %1422 = vmatprep.mubr.bf16.mxu0 0
        %1423 = vmatmul.mubr.bf16.gmra.mrb[0].mxu0 %v1388
        %v1424 = vpop.f32.mrb[0].mxu0
        %v1425 = vadd.f32 0.0, %v1424
        %v1426 = vpop.f32.mrb[0].mxu0
        %v1427 = vpop.f32.mrb[0].mxu0
        %v1428 = vadd.f32 0.0, %v1427
        %v1429 = vpop.f32.mrb[0].mxu0
        %1430 = vdwg.mxu0
        %v1432 = vsel %vm960, %v1365, 0
        %v1435 = vsel %vm960, %v1425, 0
        %v1438 = vsel %vm960, %v1428, 0
        %1440 = vmatprep.subr.mxu0 0.0
        %1441 = vmatpush1.xpose.msra.mxu0 %v1435
        %1442 = vmatprep.subr.mxu0 0.0
        %1443 = vmatpush1.xpose.msra.mxu0 %v1438
        %1444 = vmatprep.subr.mxu0 0.0
        %1445 = vmatpush1.xpose.msra.mxu0 0.0
        %1446 = vmatprep.subr.mxu0 0.0
        %1447 = vmatpush1.xpose.msra.mxu0 0.0
        %1448 = vmatprep.subr.mxu0 0.0
        %1449 = vmatpush1.xpose.msra.mxu0 0.0
        %1450 = vmatprep.subr.mxu0 0.0
        %1451 = vmatpush1.xpose.msra.mxu0 0.0
        %1452 = vmatprep.subr.mxu0 0.0
        %1453 = vmatpush1.xpose.msra.mxu0 0.0
        %1454 = vmatprep.subr.mxu0 0.0
        %1455 = vmatpush1.xpose.msra.mxu0 0.0
        %1456 = vmatprep.subr.mxu0 0.0
        %1457 = vmatpush1.xpose.msra.mxu0 0.0
        %1458 = vmatprep.subr.mxu0 0.0
        %1459 = vmatpush1.xpose.msra.mxu0 0.0
        %1460 = vmatprep.subr.mxu0 0.0
        %1461 = vmatpush1.xpose.msra.mxu0 0.0
        %1462 = vmatprep.subr.mxu0 0.0
        %1463 = vmatpush1.xpose.msra.mxu0 0.0
        %1464 = vmatprep.subr.mxu0 0.0
        %1465 = vmatpush1.xpose.msra.mxu0 0.0
        %1466 = vmatprep.subr.mxu0 0.0
        %1467 = vmatpush1.xpose.msra.mxu0 0.0
        %1468 = vmatprep.subr.mxu0 0.0
        %1469 = vmatpush1.xpose.msra.mxu0 0.0
        %1470 = vmatprep.subr.mxu0 0.0
        %1471 = vmatpush1.xpose.msra.mxu0 0.0
        %1472 = vmatprep.subr.mxu0 0.0
        %1473 = vmatpush1.xpose.msra.mxu0 0.0
        %1474 = vmatprep.subr.mxu0 0.0
        %1475 = vmatpush1.xpose.msra.mxu0 0.0
        %1476 = vmatprep.subr.mxu0 0.0
        %1477 = vmatpush1.xpose.msra.mxu0 0.0
        %1478 = vmatprep.subr.mxu0 0.0
        %1479 = vmatpush1.xpose.msra.mxu0 0.0
        %1480 = vmatprep.subr.mxu0 0.0
        %1481 = vmatpush1.xpose.msra.mxu0 0.0
        %1482 = vmatprep.subr.mxu0 0.0
        %1483 = vmatpush1.xpose.msra.mxu0 0.0
        %1484 = vmatprep.subr.mxu0 0.0
        %1485 = vmatpush1.xpose.msra.mxu0 0.0
        %1486 = vmatprep.subr.mxu0 0.0
        %1487 = vmatpush1.xpose.msra.mxu0 0.0
        %1488 = vmatprep.subr.mxu0 0.0
        %1489 = vmatpush1.xpose.msra.mxu0 0.0
        %1490 = vmatprep.subr.mxu0 0.0
        %1491 = vmatpush1.xpose.msra.mxu0 0.0
        %1492 = vmatprep.subr.mxu0 0.0
        %1493 = vmatpush1.xpose.msra.mxu0 0.0
        %1494 = vmatprep.subr.mxu0 0.0
        %1495 = vmatpush1.xpose.msra.mxu0 0.0
        %1496 = vmatprep.subr.mxu0 0.0
        %1497 = vmatpush1.xpose.msra.mxu0 0.0
        %1498 = vmatprep.subr.mxu0 0.0
        %1499 = vmatpush1.xpose.msra.mxu0 0.0
        %1500 = vmatprep.subr.mxu0 0.0
        %1501 = vmatpush1.xpose.msra.mxu0 0.0
        %1502 = vmatprep.subr.mxu0 0.0
        %1503 = vmatpush1.xpose.msra.mxu0 0.0
        %1504 = vmatprep.mubr.f32.mxu0 0.0
        %1505 = vmatmul.mubr.f32.gmra.mrb[0].mxu0 %v1432
        %v1506 = vpop.f32.mrb[0].mxu0
        %v1507 = vadd.f32 0.0, %v1506
        %v1508 = vpop.f32.mrb[0].mxu0
        %1509 = vdwg.mxu0
        %vm1510 = vcmask 130048
        %v1511 = vsel %vm1510, %v1507, -inf
        %1512 = vmax.xlane.f32.xlu0 %v1511
        %v1513 = vpop.xlane.xlu0 %1512
        %v1514 = vsub.f32 %v1507, %v1513
        %v1515 = vmul.f32 %v1514, 1.442695
        %v1516 = vpow.pop %v1515
        %v1517 = vsel %vm1510, %v1516, 0.0
        %1518 = vadd.xlane.f32.xlu0 %v1517
        %v1519 = vpop.xlane.xlu0 %1518
        %v1520 = vrcp.pop %v1519
        %v1521 = vmul.f32 %v1516, %v1520
        %1522 = vrot.lane.b32.xlu0 %v1425, 96
        %v1523 = vpop.permute.xlu0 %1522
        %1524 = vrot.lane.b32.xlu0 %v1428, 96
        %v1525 = vpop.permute.xlu0 %1524
        %v1529 = vsel %vm1510, %v1521, 0
        %1531 = vmatprep.subr.mxu0 0.0
        %1532 = vmatpush1.msra.mxu0 %v1523
        %1533 = vmatprep.subr.mxu0 0.0
        %1534 = vmatpush1.msra.mxu0 %v1525
        %1535 = vmatprep.subr.mxu0 0.0
        %1536 = vmatpush1.msra.mxu0 0.0
        %1537 = vmatprep.subr.mxu0 0.0
        %1538 = vmatpush1.msra.mxu0 0.0
        %1539 = vmatprep.subr.mxu0 0.0
        %1540 = vmatpush1.msra.mxu0 0.0
        %1541 = vmatprep.subr.mxu0 0.0
        %1542 = vmatpush1.msra.mxu0 0.0
        %1543 = vmatprep.subr.mxu0 0.0
        %1544 = vmatpush1.msra.mxu0 0.0
        %1545 = vmatprep.subr.mxu0 0.0
        %1546 = vmatpush1.msra.mxu0 0.0
        %1547 = vmatprep.subr.mxu0 0.0
        %1548 = vmatpush1.msra.mxu0 0.0
        %1549 = vmatprep.subr.mxu0 0.0
        %1550 = vmatpush1.msra.mxu0 0.0
        %1551 = vmatprep.subr.mxu0 0.0
        %1552 = vmatpush1.msra.mxu0 0.0
        %1553 = vmatprep.subr.mxu0 0.0
        %1554 = vmatpush1.msra.mxu0 0.0
        %1555 = vmatprep.subr.mxu0 0.0
        %1556 = vmatpush1.msra.mxu0 0.0
        %1557 = vmatprep.subr.mxu0 0.0
        %1558 = vmatpush1.msra.mxu0 0.0
        %1559 = vmatprep.subr.mxu0 0.0
        %1560 = vmatpush1.msra.mxu0 0.0
        %1561 = vmatprep.subr.mxu0 0.0
        %1562 = vmatpush1.msra.mxu0 0.0
        %1563 = vmatprep.subr.mxu0 0.0
        %1564 = vmatpush1.msra.mxu0 0.0
        %1565 = vmatprep.subr.mxu0 0.0
        %1566 = vmatpush1.msra.mxu0 0.0
        %1567 = vmatprep.subr.mxu0 0.0
        %1568 = vmatpush1.msra.mxu0 0.0
        %1569 = vmatprep.subr.mxu0 0.0
        %1570 = vmatpush1.msra.mxu0 0.0
        %1571 = vmatprep.subr.mxu0 0.0
        %1572 = vmatpush1.msra.mxu0 0.0
        %1573 = vmatprep.subr.mxu0 0.0
        %1574 = vmatpush1.msra.mxu0 0.0
        %1575 = vmatprep.subr.mxu0 0.0
        %1576 = vmatpush1.msra.mxu0 0.0
        %1577 = vmatprep.subr.mxu0 0.0
        %1578 = vmatpush1.msra.mxu0 0.0
        %1579 = vmatprep.subr.mxu0 0.0
        %1580 = vmatpush1.msra.mxu0 0.0
        %1581 = vmatprep.subr.mxu0 0.0
        %1582 = vmatpush1.msra.mxu0 0.0
        %1583 = vmatprep.subr.mxu0 0.0
        %1584 = vmatpush1.msra.mxu0 0.0
        %1585 = vmatprep.subr.mxu0 0.0
        %1586 = vmatpush1.msra.mxu0 0.0
        %1587 = vmatprep.subr.mxu0 0.0
        %1588 = vmatpush1.msra.mxu0 0.0
        %1589 = vmatprep.subr.mxu0 0.0
        %1590 = vmatpush1.msra.mxu0 0.0
        %1591 = vmatprep.subr.mxu0 0.0
        %1592 = vmatpush1.msra.mxu0 0.0
        %1593 = vmatprep.subr.mxu0 0.0
        %1594 = vmatpush1.msra.mxu0 0.0
        %1595 = vmatprep.mubr.f32.mxu0 0.0
        %1596 = vmatmul.mubr.f32.gmra.mrb[0].mxu0 %v1529
        %v1597 = vpop.f32.mrb[0].mxu0
        %v1598 = vadd.f32 0.0, %v1597
        %v1599 = vpop.f32.mrb[0].mxu0
        %1600 = vdwg.mxu0
        %v1601 = vpack.c.bf16 %v1598, %v1598
        %v1602 = vld [vmem:[%s11] sm:$0xf]
        %v1603 = vld [vmem:[%s11 + $0x4] sm:$0xf]
        %v1604 = vld [vmem:[%s11 + $0x8] sm:$0xf]
        %v1605 = vld [vmem:[%s11 + $0xc] sm:$0xf]
        %v1610 = vunpack.c.l.b16 %v1602
        %v1611 = vunpack.c.l.b16 %v1603
        %v1612 = vunpack.c.l.b16 %v1604
        %v1613 = vunpack.c.l.b16 %v1605
        %v1614 = vpack.c.b16 %v1611, %v1610
        %v1615 = vpack.c.b16 %v1613, %v1612
        %v1619 = vsel %vm960, %v1601, 0
        %1621 = vmatprep.subr.bf16.mxu0 0
        %1622 = vmatpush1.bf16.msra.mxu0 %v1614
        %1623 = vmatprep.subr.bf16.mxu0 0
        %1624 = vmatpush1.bf16.msra.mxu0 %v1615
        %1625 = vmatprep.subr.bf16.mxu0 0
        %1626 = vmatpush1.bf16.msra.mxu0 0
        %1627 = vmatprep.subr.bf16.mxu0 0
        %1628 = vmatpush1.bf16.msra.mxu0 0
        %1629 = vmatprep.subr.bf16.mxu0 0
        %1630 = vmatpush1.bf16.msra.mxu0 0
        %1631 = vmatprep.subr.bf16.mxu0 0
        %1632 = vmatpush1.bf16.msra.mxu0 0
        %1633 = vmatprep.subr.bf16.mxu0 0
        %1634 = vmatpush1.bf16.msra.mxu0 0
        %1635 = vmatprep.subr.bf16.mxu0 0
        %1636 = vmatpush1.bf16.msra.mxu0 0
        %1637 = vmatprep.subr.bf16.mxu0 0
        %1638 = vmatpush1.bf16.msra.mxu0 0
        %1639 = vmatprep.subr.bf16.mxu0 0
        %1640 = vmatpush1.bf16.msra.mxu0 0
        %1641 = vmatprep.subr.bf16.mxu0 0
        %1642 = vmatpush1.bf16.msra.mxu0 0
        %1643 = vmatprep.subr.bf16.mxu0 0
        %1644 = vmatpush1.bf16.msra.mxu0 0
        %1645 = vmatprep.subr.bf16.mxu0 0
        %1646 = vmatpush1.bf16.msra.mxu0 0
        %1647 = vmatprep.subr.bf16.mxu0 0
        %1648 = vmatpush1.bf16.msra.mxu0 0
        %1649 = vmatprep.subr.bf16.mxu0 0
        %1650 = vmatpush1.bf16.msra.mxu0 0
        %1651 = vmatprep.subr.bf16.mxu0 0
        %1652 = vmatpush1.bf16.msra.mxu0 0
        %1653 = vmatprep.mubr.bf16.mxu0 0
        %1654 = vmatmul.mubr.bf16.gmra.mrb[0].mxu0 %v1619
        %v1655 = vpop.f32.mrb[0].mxu0
        %v1656 = vadd.f32 0.0, %v1655
        %v1657 = vpop.f32.mrb[0].mxu0
        %v1658 = vpop.f32.mrb[0].mxu0
        %v1659 = vpop.f32.mrb[0].mxu0
        %1660 = vdwg.mxu0
        %v1661 = vadd.f32 %v1280, %v1656
        %v1662 = vsel %vm960, %v1661, 0.0
        %1663 = vadd.xlane.f32.xlu0 %v1662
        %v1664 = vpop.xlane.xlu0 %1663
        %v1665 = vmul.f32 %v1664, %v964
        %v1666 = vsub.f32 %v1661, %v1665
        %v1667 = vmul.f32 %v1666, %v1666
        %v1668 = vsel %vm960, %v1667, 0.0
        %1669 = vadd.xlane.f32.xlu0 %v1668
        %v1670 = vpop.xlane.xlu0 %1669
        %v1671 = vmul.f32 %v1670, %v964
        %v1672 = vadd.f32 %v1671, 1e-05
        %v1673 = vrsqrt.pop %v1672
        %v1674 = vmul.f32 %v1666, %v1673
        %v1675 = vld [vmem:[%s20] sm:$0x1]
        %v1677 = vlaneseq
        %v1678 = vshrl.u32 %v1677, 7
        %v1679 = vsub.s32 0, %v1678
        %v1680 = vrot.slane %v1675, %v1679
        %v1682 = vmul.f32 %v1674, %v1680
        %v1683 = vld [vmem:[%s21] sm:$0x1]
        %v1685 = vlaneseq
        %v1686 = vshrl.u32 %v1685, 7
        %v1687 = vsub.s32 0, %v1686
        %v1688 = vrot.slane %v1683, %v1687
        %v1690 = vadd.f32 %v1682, %v1688
        %v1691 = vpack.c.bf16 %v1690, %v1690
        %v1692 = vld [vmem:[%s12] sm:$0xf]
        %v1693 = vld [vmem:[%s12 + $0x4] sm:$0xf]
        %v1694 = vld [vmem:[%s12 + $0x8] sm:$0xf]
        %v1695 = vld [vmem:[%s12 + $0xc] sm:$0xf]
        %v1696 = vld [vmem:[%s13] sm:$0x1]
        %v1698 = vlaneseq
        %v1699 = vshrl.u32 %v1698, 7
        %v1700 = vsub.s32 0, %v1699
        %v1701 = vrot.slane %v1696, %v1700
        %v1707 = vunpack.c.l.b16 %v1692
        %v1708 = vunpack.c.l.b16 %v1693
        %v1709 = vunpack.c.l.b16 %v1694
        %v1710 = vunpack.c.l.b16 %v1695
        %v1711 = vpack.c.b16 %v1708, %v1707
        %v1712 = vpack.c.b16 %v1710, %v1709
        %v1716 = vsel %vm960, %v1691, 0
        %1718 = vmatprep.subr.bf16.mxu0 0
        %1719 = vmatpush1.bf16.msra.mxu0 %v1711
        %1720 = vmatprep.subr.bf16.mxu0 0
        %1721 = vmatpush1.bf16.msra.mxu0 %v1712
        %1722 = vmatprep.subr.bf16.mxu0 0
        %1723 = vmatpush1.bf16.msra.mxu0 0
        %1724 = vmatprep.subr.bf16.mxu0 0
        %1725 = vmatpush1.bf16.msra.mxu0 0
        %1726 = vmatprep.subr.bf16.mxu0 0
        %1727 = vmatpush1.bf16.msra.mxu0 0
        %1728 = vmatprep.subr.bf16.mxu0 0
        %1729 = vmatpush1.bf16.msra.mxu0 0
        %1730 = vmatprep.subr.bf16.mxu0 0
        %1731 = vmatpush1.bf16.msra.mxu0 0
        %1732 = vmatprep.subr.bf16.mxu0 0
        %1733 = vmatpush1.bf16.msra.mxu0 0
        %1734 = vmatprep.subr.bf16.mxu0 0
        %1735 = vmatpush1.bf16.msra.mxu0 0
        %1736 = vmatprep.subr.bf16.mxu0 0
        %1737 = vmatpush1.bf16.msra.mxu0 0
        %1738 = vmatprep.subr.bf16.mxu0 0
        %1739 = vmatpush1.bf16.msra.mxu0 0
        %1740 = vmatprep.subr.bf16.mxu0 0
        %1741 = vmatpush1.bf16.msra.mxu0 0
        %1742 = vmatprep.subr.bf16.mxu0 0
        %1743 = vmatpush1.bf16.msra.mxu0 0
        %1744 = vmatprep.subr.bf16.mxu0 0
        %1745 = vmatpush1.bf16.msra.mxu0 0
        %1746 = vmatprep.subr.bf16.mxu0 0
        %1747 = vmatpush1.bf16.msra.mxu0 0
        %1748 = vmatprep.subr.bf16.mxu0 0
        %1749 = vmatpush1.bf16.msra.mxu0 0
        %1750 = vmatprep.mubr.bf16.mxu0 0
        %1751 = vmatmul.mubr.bf16.gmra.mrb[0].mxu0 %v1716
        %v1752 = vpop.f32.mrb[0].mxu0
        %v1753 = vadd.f32 %v1701, %v1752
        %v1754 = vpop.f32.mrb[0].mxu0
        %v1755 = vpop.f32.mrb[0].mxu0
        %v1756 = vpop.f32.mrb[0].mxu0
        %1757 = vdwg.mxu0
        %v1758 = vmax.f32 %v1753, 0.0
        %v1759 = vpack.c.bf16 %v1758, %v1758
        %v1760 = vld [vmem:[%s14] sm:$0xf]
        %v1761 = vld [vmem:[%s14 + $0x4] sm:$0xf]
        %v1762 = vld [vmem:[%s14 + $0x8] sm:$0xf]
        %v1763 = vld [vmem:[%s14 + $0xc] sm:$0xf]
        %v1764 = vld [vmem:[%s14 + $0x10] sm:$0xf]
        %v1765 = vld [vmem:[%s14 + $0x14] sm:$0xf]
        %v1766 = vld [vmem:[%s14 + $0x18] sm:$0xf]
        %v1767 = vld [vmem:[%s14 + $0x1c] sm:$0xf]
        %v1768 = vld [vmem:[%s14 + $0x20] sm:$0xf]
        %v1769 = vld [vmem:[%s14 + $0x24] sm:$0xf]
        %v1770 = vld [vmem:[%s14 + $0x28] sm:$0xf]
        %v1771 = vld [vmem:[%s14 + $0x2c] sm:$0xf]
        %v1772 = vld [vmem:[%s14 + $0x30] sm:$0xf]
        %v1773 = vld [vmem:[%s14 + $0x34] sm:$0xf]
        %v1774 = vld [vmem:[%s14 + $0x38] sm:$0xf]
        %v1775 = vld [vmem:[%s14 + $0x3c] sm:$0xf]
        %v1776 = vld [vmem:[%s15] sm:$0x1]
        %v1778 = vlaneseq
        %v1779 = vshrl.u32 %v1778, 7
        %v1780 = vsub.s32 0, %v1779
        %v1781 = vrot.slane %v1776, %v1780
        %v1799 = vunpack.c.l.b16 %v1760
        %v1800 = vunpack.c.l.b16 %v1761
        %v1801 = vunpack.c.l.b16 %v1762
        %v1802 = vunpack.c.l.b16 %v1763
        %v1803 = vunpack.c.l.b16 %v1764
        %v1804 = vunpack.c.l.b16 %v1765
        %v1805 = vunpack.c.l.b16 %v1766
        %v1806 = vunpack.c.l.b16 %v1767
        %v1807 = vunpack.c.l.b16 %v1768
        %v1808 = vunpack.c.l.b16 %v1769
        %v1809 = vunpack.c.l.b16 %v1770
        %v1810 = vunpack.c.l.b16 %v1771
        %v1811 = vunpack.c.l.b16 %v1772
        %v1812 = vunpack.c.l.b16 %v1773
        %v1813 = vunpack.c.l.b16 %v1774
        %v1814 = vunpack.c.l.b16 %v1775
        %v1815 = vpack.c.b16 %v1800, %v1799
        %v1816 = vpack.c.b16 %v1802, %v1801
        %v1817 = vpack.c.b16 %v1804, %v1803
        %v1818 = vpack.c.b16 %v1806, %v1805
        %v1819 = vpack.c.b16 %v1808, %v1807
        %v1820 = vpack.c.b16 %v1810, %v1809
        %v1821 = vpack.c.b16 %v1812, %v1811
        %v1822 = vpack.c.b16 %v1814, %v1813
        %1831 = vmatprep.subr.bf16.mxu0 0
        %1832 = vmatpush1.bf16.msra.mxu0 %v1815
        %1833 = vmatprep.subr.bf16.mxu0 0
        %1834 = vmatpush1.bf16.msra.mxu0 %v1816
        %1835 = vmatprep.subr.bf16.mxu0 0
        %1836 = vmatpush1.bf16.msra.mxu0 %v1817
        %1837 = vmatprep.subr.bf16.mxu0 0
        %1838 = vmatpush1.bf16.msra.mxu0 %v1818
        %1839 = vmatprep.subr.bf16.mxu0 0
        %1840 = vmatpush1.bf16.msra.mxu0 %v1819
        %1841 = vmatprep.subr.bf16.mxu0 0
        %1842 = vmatpush1.bf16.msra.mxu0 %v1820
        %1843 = vmatprep.subr.bf16.mxu0 0
        %1844 = vmatpush1.bf16.msra.mxu0 %v1821
        %1845 = vmatprep.subr.bf16.mxu0 0
        %1846 = vmatpush1.bf16.msra.mxu0 %v1822
        %1847 = vmatprep.subr.bf16.mxu0 0
        %1848 = vmatpush1.bf16.msra.mxu0 0
        %1849 = vmatprep.subr.bf16.mxu0 0
        %1850 = vmatpush1.bf16.msra.mxu0 0
        %1851 = vmatprep.subr.bf16.mxu0 0
        %1852 = vmatpush1.bf16.msra.mxu0 0
        %1853 = vmatprep.subr.bf16.mxu0 0
        %1854 = vmatpush1.bf16.msra.mxu0 0
        %1855 = vmatprep.subr.bf16.mxu0 0
        %1856 = vmatpush1.bf16.msra.mxu0 0
        %1857 = vmatprep.subr.bf16.mxu0 0
        %1858 = vmatpush1.bf16.msra.mxu0 0
        %1859 = vmatprep.subr.bf16.mxu0 0
        %1860 = vmatpush1.bf16.msra.mxu0 0
        %1861 = vmatprep.subr.bf16.mxu0 0
        %1862 = vmatpush1.bf16.msra.mxu0 0
        %1863 = vmatprep.mubr.bf16.mxu0 0
        %1864 = vmatmul.mubr.bf16.gmra.mrb[0].mxu0 %v1759
        %v1865 = vpop.f32.mrb[0].mxu0
        %v1866 = vadd.f32 %v1781, %v1865
        %v1867 = vpop.f32.mrb[0].mxu0
        %v1868 = vpop.f32.mrb[0].mxu0
        %v1869 = vpop.f32.mrb[0].mxu0
        %1870 = vdwg.mxu0
        %v1871 = vadd.f32 %v1661, %v1866
        %v1872 = vpack.c.bf16 %v1871, %v1871
        %v1873 = vld [vmem:[%s22] sm:$0xf]
        %v1874 = vld [vmem:[%s22 + $0x4] sm:$0xf]
        %v1875 = vld [vmem:[%s22 + $0x8] sm:$0xf]
        %v1876 = vld [vmem:[%s22 + $0xc] sm:$0xf]
        %v1877 = vld [vmem:[%s23] sm:$0x1]
        %v1879 = vlaneseq
        %v1880 = vshrl.u32 %v1879, 7
        %v1881 = vsub.s32 0, %v1880
        %v1882 = vrot.slane %v1877, %v1881
        %v1888 = vunpack.c.l.b16 %v1873
        %v1889 = vunpack.c.l.b16 %v1874
        %v1890 = vunpack.c.l.b16 %v1875
        %v1891 = vunpack.c.l.b16 %v1876
        %v1892 = vpack.c.b16 %v1889, %v1888
        %v1893 = vpack.c.b16 %v1891, %v1890
        %v1897 = vsel %vm960, %v1872, 0
        %1899 = vmatprep.subr.bf16.mxu0 0
        %1900 = vmatpush1.bf16.msra.mxu0 %v1892
        %1901 = vmatprep.subr.bf16.mxu0 0
        %1902 = vmatpush1.bf16.msra.mxu0 %v1893
        %1903 = vmatprep.subr.bf16.mxu0 0
        %1904 = vmatpush1.bf16.msra.mxu0 0
        %1905 = vmatprep.subr.bf16.mxu0 0
        %1906 = vmatpush1.bf16.msra.mxu0 0
        %1907 = vmatprep.subr.bf16.mxu0 0
        %1908 = vmatpush1.bf16.msra.mxu0 0
        %1909 = vmatprep.subr.bf16.mxu0 0
        %1910 = vmatpush1.bf16.msra.mxu0 0
        %1911 = vmatprep.subr.bf16.mxu0 0
        %1912 = vmatpush1.bf16.msra.mxu0 0
        %1913 = vmatprep.subr.bf16.mxu0 0
        %1914 = vmatpush1.bf16.msra.mxu0 0
        %1915 = vmatprep.subr.bf16.mxu0 0
        %1916 = vmatpush1.bf16.msra.mxu0 0
        %1917 = vmatprep.subr.bf16.mxu0 0
        %1918 = vmatpush1.bf16.msra.mxu0 0
        %1919 = vmatprep.subr.bf16.mxu0 0
        %1920 = vmatpush1.bf16.msra.mxu0 0
        %1921 = vmatprep.subr.bf16.mxu0 0
        %1922 = vmatpush1.bf16.msra.mxu0 0
        %1923 = vmatprep.subr.bf16.mxu0 0
        %1924 = vmatpush1.bf16.msra.mxu0 0
        %1925 = vmatprep.subr.bf16.mxu0 0
        %1926 = vmatpush1.bf16.msra.mxu0 0
        %1927 = vmatprep.subr.bf16.mxu0 0
        %1928 = vmatpush1.bf16.msra.mxu0 0
        %1929 = vmatprep.subr.bf16.mxu0 0
        %1930 = vmatpush1.bf16.msra.mxu0 0
        %1931 = vmatprep.mubr.bf16.mxu0 0
        %1932 = vmatmul.mubr.bf16.gmra.mrb[0].mxu0 %v1897
        %v1933 = vpop.f32.mrb[0].mxu0
        %v1934 = vadd.f32 %v1882, %v1933
        %v1935 = vpop.f32.mrb[0].mxu0
        %v1936 = vpop.f32.mrb[0].mxu0
        %v1937 = vpop.f32.mrb[0].mxu0
        %1938 = vdwg.mxu0
        %1939 = vst [vmem:[%s743] sm:$0xff] %v1934
        %s1940 = sand.u32 %s560, 1
        %s1941 = scalar_lea.sflag [#allocation3], %s1940
        %s1942 = sand.u32 %s560, 1
        %s1943 = smul.addr %s1942, 8
        %s1944 = scalar_lea.vmem [#allocation2], %s1943
        // Predicated region
        $region117: #{encoder_decoder_forward.1} parent=115 // pred_check
          %p1945 = pneg %p570
        $region118: #{encoder_decoder_forward.1} parent=115 // pred_check_branch
          %1947 = sbr.rel (%p1945) target = $region120
        $region119: #{encoder_decoder_forward.1} parent=115 // pred_region
          %s1949 = ssub.s32 128, 128
          %1950 = vsyncadd %s1941, %s1949
          %s1951 = smul.addr %s38, 128
          %s1952 = scalar_lea.hbm %s24, %s1951
          %s1954 = sshll.u32 %s1944, 4
          %s1955 = int_to_ptr.vmem [resolvable:$true] %s1954
          %1957 = dma.vmem_to_hbm [thread:$0]  %s1955, 128, %s1952, %s1941
        $region120: #{encoder_decoder_forward.1} parent=115 // pred_fallthru
          _
      $region116: #{encoder_decoder_forward.1} parent=5 // pred_fallthru
        _
      %p1958 = scmp.le.s32.totalorder 2, %s33
      // Predicated region
      $region121: #{encoder_decoder_forward.1} parent=5 // pred_check
        %p1959 = pneg %p1958
      $region122: #{encoder_decoder_forward.1} parent=5 // pred_check_branch
        %1961 = sbr.rel (%p1959) target = $region124
      $region123: #{encoder_decoder_forward.1} parent=5 // pred_region
        %s1962 = ssub.s32 %s33, 2
        // Predicated region
        $region125: #{encoder_decoder_forward.1} parent=123 // pred_check
          %p1963 = pneg %p576
        $region126: #{encoder_decoder_forward.1} parent=123 // pred_check_branch
          %1965 = sbr.rel (%p1963) target = $region128
        $region127: #{encoder_decoder_forward.1} parent=123 // pred_region
          %s1966 = sand.u32 %s561, 1
          %s1967 = scalar_lea.sflag [#allocation3], %s1966
          %s1968 = sand.u32 %s561, 1
          %s1969 = smul.addr %s1968, 8
          %s1970 = scalar_lea.vmem [#allocation2], %s1969
          %1971 = dma.done %s1967, 128
        $region128: #{encoder_decoder_forward.1} parent=123 // pred_fallthru
          _
      $region124: #{encoder_decoder_forward.1} parent=5 // pred_fallthru
        _
    $region6: #{encoder_decoder_forward.1} parent=1 // loop_footer
      %s37 = sadd.s32 1, %s33
    $region7: #{encoder_decoder_forward.1} parent=1 // loop_footer_branch
      %32 = sbr.rel target = $region3
    $region8: #{encoder_decoder_forward.1} parent=1 // loop_exit
      _
    %1972 = vsyncpa [#allocation3], 1
    %s1973 = scalar_lea.sflag [#allocation3], 1
    %1974 = vsyncpa %s1973, 1

</llo_original>
